<compile_context>
chip_gen: v7x
topology: tpu7x:2x2x1
jax: 0.10.0
libtpu: 0.0.40
codegen_flags: <defaults>
</compile_context>

<pallas_src>
import jax
import jax.numpy as jnp
from jax.experimental import pallas as pl
from jax.experimental.pallas import tpu as pltpu


def _round_up(x, m):
    return ((x + m - 1) // m) * m


def _clip_classifier_kernel(
    x_ref,      # [TM, TK]      bf16 flattened image slab
    wve_ref,    # [TK, FEAT]    bf16 frozen "vision encoder" K-slab (streamed)
    bve_ref,    # [1, FEAT]     f32
    w1_ref,     # [FEAT, 512]   bf16 (resident)
    b1_ref,     # [1, 512]      f32
    w2_ref,     # [512, 256]    bf16 (resident)
    b2_ref,     # [1, 256]      f32
    w3_ref,     # [256, NC_pad] bf16 (resident)
    b3_ref,     # [1, NC_pad]   f32
    out_ref,    # [TM, NC_pad]  f32
    acc_ref,    # [TM, FEAT]    f32 scratch accumulator
):
    k = pl.program_id(1)

    @pl.when(k == 0)
    def _():
        acc_ref[...] = jnp.zeros_like(acc_ref)

    # Streamed encoder matmul slab, f32 accumulation on the MXU.
    acc_ref[...] += jnp.dot(
        x_ref[...], wve_ref[...], preferred_element_type=jnp.float32
    )

    @pl.when(k == pl.num_programs(1) - 1)
    def _():
        # f32 epilogue (bias + ReLU); bf16 only at the MXU inputs.
        feats = acc_ref[...] + bve_ref[...]
        h1 = jnp.dot(feats.astype(jnp.bfloat16), w1_ref[...],
                     preferred_element_type=jnp.float32) + b1_ref[...]
        h1 = jnp.maximum(h1, 0.0)
        h2 = jnp.dot(h1.astype(jnp.bfloat16), w2_ref[...],
                     preferred_element_type=jnp.float32) + b2_ref[...]
        h2 = jnp.maximum(h2, 0.0)
        logits = jnp.dot(h2.astype(jnp.bfloat16), w3_ref[...],
                         preferred_element_type=jnp.float32) + b3_ref[...]
        out_ref[...] = logits.astype(out_ref.dtype)


def clip_classifier_forward(images, params, *, tk=256, tm_max=128):
    """images: [B, 3, H, W] float32 (NCHW). Returns logits [B, num_classes] (float32)."""
    B = images.shape[0]
    x = images.reshape(B, -1).astype(jnp.bfloat16)   # glue flatten + bf16 cast in plain JAX

    wve, bve, w1, b1, w2, b2, w3, b3 = params
    in_dim, feat = wve.shape
    hid1 = w1.shape[1]
    hid2 = w2.shape[1]
    num_classes = w3.shape[1]
    assert feat % 128 == 0 and hid1 % 128 == 0 and hid2 % 128 == 0

    # --- tile / padding choices -------------------------------------------------
    TM = tm_max if B >= tm_max else _round_up(B, 8)   # tiny batch: pad to sublane only
    B_pad = _round_up(B, TM)
    IN_pad = _round_up(in_dim, tk)
    NC_pad = _round_up(num_classes, 128)              # lane-dense output slab

    x_p = jnp.pad(x, ((0, B_pad - B), (0, IN_pad - in_dim)))
    wve_p = jnp.pad(wve, ((0, IN_pad - in_dim), (0, 0)))
    w3_p = jnp.pad(w3, ((0, 0), (0, NC_pad - num_classes)))
    b3_p = jnp.pad(b3, ((0, 0), (0, NC_pad - num_classes)))

    grid = (B_pad // TM, IN_pad // tk)

    resident = lambda shape: pl.BlockSpec(shape, lambda i, k: (0, 0))

    out = pl.pallas_call(
        _clip_classifier_kernel,
        out_shape=jax.ShapeDtypeStruct((B_pad, NC_pad), jnp.float32),
        grid=grid,
        in_specs=[
            pl.BlockSpec((TM, tk), lambda i, k: (i, k)),     # x: batch x K tiles
            pl.BlockSpec((tk, feat), lambda i, k: (k, 0)),   # wve: streamed K slabs
            resident((1, feat)),                             # bve
            resident((feat, hid1)), resident((1, hid1)),     # w1, b1 (resident)
            resident((hid1, hid2)), resident((1, hid2)),     # w2, b2 (resident)
            resident((hid2, NC_pad)), resident((1, NC_pad)), # w3, b3 (resident)
        ],
        out_specs=pl.BlockSpec((TM, NC_pad), lambda i, k: (i, 0)),
        scratch_shapes=[pltpu.VMEM((TM, feat), jnp.float32)],
        compiler_params=pltpu.CompilerParams(
            dimension_semantics=("parallel", "arbitrary"),
            vmem_limit_bytes=48 * 1024 * 1024,   # headroom below v7x's 64 MiB physical VMEM
        ),
    )(x_p, wve_p, bve, w1, b1, w2, b2, w3_p, b3_p)

    return out[:B, :num_classes]


def init_params(key, in_dim, feature_dim, num_classes):
    ks = jax.random.split(key, 8)

    def linear_init(kw, kb, fan_in, fan_out):
        # torch.nn.Linear default: U(-1/sqrt(fan_in), 1/sqrt(fan_in))
        bound = 1.0 / jnp.sqrt(fan_in)
        w = jax.random.uniform(kw, (fan_in, fan_out), jnp.float32, -bound, bound)
        b = jax.random.uniform(kb, (1, fan_out), jnp.float32, -bound, bound)
        return w.astype(jnp.bfloat16), b   # bf16 weights in HBM, f32 biases

    wve, bve = linear_init(ks[0], ks[1], in_dim, feature_dim)   # frozen encoder stand-in
    w1, b1 = linear_init(ks[2], ks[3], feature_dim, 512)
    w2, b2 = linear_init(ks[4], ks[5], 512, 256)
    w3, b3 = linear_init(ks[6], ks[7], 256, num_classes)
    return (wve, bve, w1, b1, w2, b2, w3, b3)


if __name__ == "__main__":
    key = jax.random.PRNGKey(0)
    k_img, k_par = jax.random.split(key)

    B, C, H, W = 2, 3, 16, 16          # small NCHW image batch
    FEATURE_DIM = 512                   # CLIP ViT-B/32 visual feature dim
    NUM_CLASSES = 10

    images = jax.random.normal(k_img, (B, C, H, W), dtype=jnp.float32)
    params = init_params(k_par, C * H * W, FEATURE_DIM, NUM_CLASSES)

    logits = clip_classifier_forward(images, params)
    jax.block_until_ready(logits)
    assert logits.shape == (B, NUM_CLASSES)

    # Reference in plain JAX mirroring the kernel's bf16-input / f32-accumulate numerics.
    wve, bve, w1, b1, w2, b2, w3, b3 = params
    xf = images.reshape(B, -1).astype(jnp.bfloat16)
    feats = jnp.dot(xf, wve, preferred_element_type=jnp.float32) + bve
    h1 = jnp.maximum(jnp.dot(feats.astype(jnp.bfloat16), w1,
                             preferred_element_type=jnp.float32) + b1, 0.0)
    h2 = jnp.maximum(jnp.dot(h1.astype(jnp.bfloat16), w2,
                             preferred_element_type=jnp.float32) + b2, 0.0)
    ref = jnp.dot(h2.astype(jnp.bfloat16), w3,
                  preferred_element_type=jnp.float32) + b3

    assert jnp.allclose(logits, ref, atol=2e-2, rtol=2e-2), (
        float(jnp.max(jnp.abs(logits - ref))))

    print("KERNEL_OK")
</pallas_src>

<mosaic_0001>
module attributes {stable_mosaic.version = 11 : i64} {
  func.func @_clip_classifier_kernel(%arg0: i32, %arg1: i32, %arg2: memref<8x256xbf16, #tpu.memory_space<vmem>>, %arg3: memref<256x512xbf16, #tpu.memory_space<vmem>>, %arg4: memref<1x512xf32, #tpu.memory_space<vmem>>, %arg5: memref<512x512xbf16, #tpu.memory_space<vmem>>, %arg6: memref<1x512xf32, #tpu.memory_space<vmem>>, %arg7: memref<512x256xbf16, #tpu.memory_space<vmem>>, %arg8: memref<1x256xf32, #tpu.memory_space<vmem>>, %arg9: memref<256x128xbf16, #tpu.memory_space<vmem>>, %arg10: memref<1x128xf32, #tpu.memory_space<vmem>>, %arg11: memref<8x128xf32, #tpu.memory_space<vmem>>, %arg12: memref<8x512xf32, #tpu.memory_space<vmem>>) attributes {dimension_semantics = [#tpu.dimension_semantics<parallel>, #tpu.dimension_semantics<arbitrary>], iteration_bounds = array<i64: 1, 3>, scalar_prefetch = 0 : i64, scratch_operands = 1 : i64, tpu.core_type = #tpu.core_type<tc>, window_params = [{transform_indices = @transform_0, window_bounds = array<i64: 8, 256>}, {transform_indices = @transform_1, window_bounds = array<i64: 256, 512>}, {pipeline_mode = #tpu.pipeline_mode<synchronous>, transform_indices = @transform_2, window_bounds = array<i64: 1, 512>}, {pipeline_mode = #tpu.pipeline_mode<synchronous>, transform_indices = @transform_3, window_bounds = array<i64: 512, 512>}, {pipeline_mode = #tpu.pipeline_mode<synchronous>, transform_indices = @transform_4, window_bounds = array<i64: 1, 512>}, {pipeline_mode = #tpu.pipeline_mode<synchronous>, transform_indices = @transform_5, window_bounds = array<i64: 512, 256>}, {pipeline_mode = #tpu.pipeline_mode<synchronous>, transform_indices = @transform_6, window_bounds = array<i64: 1, 256>}, {pipeline_mode = #tpu.pipeline_mode<synchronous>, transform_indices = @transform_7, window_bounds = array<i64: 256, 128>}, {pipeline_mode = #tpu.pipeline_mode<synchronous>, transform_indices = @transform_8, window_bounds = array<i64: 1, 128>}, {transform_indices = @transform_9, window_bounds = array<i64: 8, 128>}]} {
    %c0_i32 = arith.constant 0 : i32
    %0 = arith.cmpi eq, %arg1, %c0_i32 : i32
    %1 = arith.extui %0 : i1 to i32
    %c0_i32_0 = arith.constant 0 : i32
    %2 = arith.cmpi ne, %1, %c0_i32_0 : i32
    scf.if %2 {
      %cst_9 = arith.constant 0.000000e+00 : f32
      %12 = vector.broadcast %cst_9 : f32 to vector<8x512xf32>
      %c0_10 = arith.constant 0 : index
      %c0_11 = arith.constant 0 : index
      %13 = vector.load %arg12[%c0_10, %c0_11] : memref<8x512xf32, #tpu.memory_space<vmem>>, vector<8x512xf32>
      tpu.vector_store %arg12[%c0_10, %c0_11], %12 {strides = array<i32>} : memref<8x512xf32, #tpu.memory_space<vmem>>, vector<8x512xf32>,
    } else {
    }
    %c0 = arith.constant 0 : index
    %c0_1 = arith.constant 0 : index
    %3 = vector.load %arg12[%c0, %c0_1] : memref<8x512xf32, #tpu.memory_space<vmem>>, vector<8x512xf32>
    %c0_2 = arith.constant 0 : index
    %c0_3 = arith.constant 0 : index
    %4 = vector.load %arg2[%c0_2, %c0_3] : memref<8x256xbf16, #tpu.memory_space<vmem>>, vector<8x256xbf16>
    %c0_4 = arith.constant 0 : index
    %c0_5 = arith.constant 0 : index
    %5 = vector.load %arg3[%c0_4, %c0_5] : memref<256x512xbf16, #tpu.memory_space<vmem>>, vector<256x512xbf16>
    %cst = arith.constant dense<0.000000e+00> : vector<8x512xf32>
    %6 = tpu.matmul %4, %5, %cst {dimension_numbers = #tpu.dot_dimension_numbers<[1], [0], [0], [1], [0, 0, 1, 1], [], []>} : vector<8x256xbf16>, vector<256x512xbf16>, vector<8x512xf32> -> vector<8x512xf32>
    %7 = arith.addf %3, %6 : vector<8x512xf32>
    %c0_6 = arith.constant 0 : index
    %c0_7 = arith.constant 0 : index
    %8 = vector.load %arg12[%c0_6, %c0_7] : memref<8x512xf32, #tpu.memory_space<vmem>>, vector<8x512xf32>
    tpu.vector_store %arg12[%c0_6, %c0_7], %7 {strides = array<i32>} : memref<8x512xf32, #tpu.memory_space<vmem>>, vector<8x512xf32>,
    %c2_i32 = arith.constant 2 : i32
    %9 = arith.cmpi eq, %arg1, %c2_i32 : i32
    %10 = arith.extui %9 : i1 to i32
    %c0_i32_8 = arith.constant 0 : i32
    %11 = arith.cmpi ne, %10, %c0_i32_8 : i32
    scf.if %11 {
      %c0_9 = arith.constant 0 : index
      %c0_10 = arith.constant 0 : index
      %12 = vector.load %arg12[%c0_9, %c0_10] : memref<8x512xf32, #tpu.memory_space<vmem>>, vector<8x512xf32>
      %c0_11 = arith.constant 0 : index
      %c0_12 = arith.constant 0 : index
      %13 = vector.load %arg4[%c0_11, %c0_12] : memref<1x512xf32, #tpu.memory_space<vmem>>, vector<1x512xf32>
      %14 = vector.broadcast %13 : vector<1x512xf32> to vector<8x512xf32>
      %15 = arith.addf %12, %14 : vector<8x512xf32>
      %16 = arith.truncf %15 : vector<8x512xf32> to vector<8x512xbf16>
      %c0_13 = arith.constant 0 : index
      %c0_14 = arith.constant 0 : index
      %17 = vector.load %arg5[%c0_13, %c0_14] : memref<512x512xbf16, #tpu.memory_space<vmem>>, vector<512x512xbf16>
      %cst_15 = arith.constant dense<0.000000e+00> : vector<8x512xf32>
      %18 = tpu.matmul %16, %17, %cst_15 {dimension_numbers = #tpu.dot_dimension_numbers<[1], [0], [0], [1], [0, 0, 1, 1], [], []>} : vector<8x512xbf16>, vector<512x512xbf16>, vector<8x512xf32> -> vector<8x512xf32>
      %c0_16 = arith.constant 0 : index
      %c0_17 = arith.constant 0 : index
      %19 = vector.load %arg6[%c0_16, %c0_17] : memref<1x512xf32, #tpu.memory_space<vmem>>, vector<1x512xf32>
      %20 = vector.broadcast %19 : vector<1x512xf32> to vector<8x512xf32>
      %21 = arith.addf %18, %20 : vector<8x512xf32>
      %cst_18 = arith.constant 0.000000e+00 : f32
      %22 = vector.broadcast %cst_18 : f32 to vector<8x512xf32>
      %23 = arith.maximumf %21, %22 : vector<8x512xf32>
      %24 = arith.truncf %23 : vector<8x512xf32> to vector<8x512xbf16>
      %c0_19 = arith.constant 0 : index
      %c0_20 = arith.constant 0 : index
      %25 = vector.load %arg7[%c0_19, %c0_20] : memref<512x256xbf16, #tpu.memory_space<vmem>>, vector<512x256xbf16>
      %cst_21 = arith.constant dense<0.000000e+00> : vector<8x256xf32>
      %26 = tpu.matmul %24, %25, %cst_21 {dimension_numbers = #tpu.dot_dimension_numbers<[1], [0], [0], [1], [0, 0, 1, 1], [], []>} : vector<8x512xbf16>, vector<512x256xbf16>, vector<8x256xf32> -> vector<8x256xf32>
      %c0_22 = arith.constant 0 : index
      %c0_23 = arith.constant 0 : index
      %27 = vector.load %arg8[%c0_22, %c0_23] : memref<1x256xf32, #tpu.memory_space<vmem>>, vector<1x256xf32>
      %28 = vector.broadcast %27 : vector<1x256xf32> to vector<8x256xf32>
      %29 = arith.addf %26, %28 : vector<8x256xf32>
      %cst_24 = arith.constant 0.000000e+00 : f32
      %30 = vector.broadcast %cst_24 : f32 to vector<8x256xf32>
      %31 = arith.maximumf %29, %30 : vector<8x256xf32>
      %32 = arith.truncf %31 : vector<8x256xf32> to vector<8x256xbf16>
      %c0_25 = arith.constant 0 : index
      %c0_26 = arith.constant 0 : index
      %33 = vector.load %arg9[%c0_25, %c0_26] : memref<256x128xbf16, #tpu.memory_space<vmem>>, vector<256x128xbf16>
      %cst_27 = arith.constant dense<0.000000e+00> : vector<8x128xf32>
      %34 = tpu.matmul %32, %33, %cst_27 {dimension_numbers = #tpu.dot_dimension_numbers<[1], [0], [0], [1], [0, 0, 1, 1], [], []>} : vector<8x256xbf16>, vector<256x128xbf16>, vector<8x128xf32> -> vector<8x128xf32>
      %c0_28 = arith.constant 0 : index
      %c0_29 = arith.constant 0 : index
      %35 = vector.load %arg10[%c0_28, %c0_29] : memref<1x128xf32, #tpu.memory_space<vmem>>, vector<1x128xf32>
      %36 = vector.broadcast %35 : vector<1x128xf32> to vector<8x128xf32>
      %37 = arith.addf %34, %36 : vector<8x128xf32>
      %c0_30 = arith.constant 0 : index
      %c0_31 = arith.constant 0 : index
      %38 = vector.load %arg11[%c0_30, %c0_31] : memref<8x128xf32, #tpu.memory_space<vmem>>, vector<8x128xf32>
      tpu.vector_store %arg11[%c0_30, %c0_31], %37 {strides = array<i32>} : memref<8x128xf32, #tpu.memory_space<vmem>>, vector<8x128xf32>,
    } else {
    }
    return
  }
  func.func @transform_0(%arg0: i32, %arg1: i32) -> (i32, i32) {
    %c0_i32 = arith.constant 0 : i32
    return %arg0, %arg1 : i32, i32
  }
  func.func @transform_1(%arg0: i32, %arg1: i32) -> (i32, i32) {
    %c0_i32 = arith.constant 0 : i32
    %c0_i32_0 = arith.constant 0 : i32
    return %arg1, %c0_i32 : i32, i32
  }
  func.func @transform_2(%arg0: i32, %arg1: i32) -> (i32, i32) {
    %c0_i32 = arith.constant 0 : i32
    %c0_i32_0 = arith.constant 0 : i32
    %c0_i32_1 = arith.constant 0 : i32
    return %c0_i32, %c0_i32_0 : i32, i32
  }
  func.func @transform_3(%arg0: i32, %arg1: i32) -> (i32, i32) {
    %c0_i32 = arith.constant 0 : i32
    %c0_i32_0 = arith.constant 0 : i32
    %c0_i32_1 = arith.constant 0 : i32
    return %c0_i32, %c0_i32_0 : i32, i32
  }
  func.func @transform_4(%arg0: i32, %arg1: i32) -> (i32, i32) {
    %c0_i32 = arith.constant 0 : i32
    %c0_i32_0 = arith.constant 0 : i32
    %c0_i32_1 = arith.constant 0 : i32
    return %c0_i32, %c0_i32_0 : i32, i32
  }
  func.func @transform_5(%arg0: i32, %arg1: i32) -> (i32, i32) {
    %c0_i32 = arith.constant 0 : i32
    %c0_i32_0 = arith.constant 0 : i32
    %c0_i32_1 = arith.constant 0 : i32
    return %c0_i32, %c0_i32_0 : i32, i32
  }
  func.func @transform_6(%arg0: i32, %arg1: i32) -> (i32, i32) {
    %c0_i32 = arith.constant 0 : i32
    %c0_i32_0 = arith.constant 0 : i32
    %c0_i32_1 = arith.constant 0 : i32
    return %c0_i32, %c0_i32_0 : i32, i32
  }
  func.func @transform_7(%arg0: i32, %arg1: i32) -> (i32, i32) {
    %c0_i32 = arith.constant 0 : i32
    %c0_i32_0 = arith.constant 0 : i32
    %c0_i32_1 = arith.constant 0 : i32
    return %c0_i32, %c0_i32_0 : i32, i32
  }
  func.func @transform_8(%arg0: i32, %arg1: i32) -> (i32, i32) {
    %c0_i32 = arith.constant 0 : i32
    %c0_i32_0 = arith.constant 0 : i32
    %c0_i32_1 = arith.constant 0 : i32
    return %c0_i32, %c0_i32_0 : i32, i32
  }
  func.func @transform_9(%arg0: i32, %arg1: i32) -> (i32, i32) {
    %c0_i32 = arith.constant 0 : i32
    %c0_i32_0 = arith.constant 0 : i32
    return %arg0, %c0_i32 : i32, i32
  }
}

</mosaic_0001>

<llo_original>
// kernel: tpu_custom_call.1
$region0: #{tpu_custom_call.1}
  #allocation0 [shape = 'u32[]', space=smem, size = 0x4, offset = 0x4, fixed_abs, tag = 'smem constant byte address 0x4 - core index']
  #allocation1 [shape = 'u32[144,128]{1,0:T(1,128)}', space=vmem, size = 0x12000, scoped, tag = 'internal scratch']
  #allocation2 [shape = 'f32[8,512]{1,0:T(8,128)}', space=vmem, size = 0x4000, scoped, tag = 'scratch operand']
  %s0 = inlined_call_operand.hbm [shape: bf16[8,768], index: 0, kind: input, shape index: {}]
  %s1 = inlined_call_operand.hbm [shape: bf16[768,512], index: 1, kind: input, shape index: {}]
  %s2 = inlined_call_operand.vmem [shape: f32[1,512], index: 2, kind: input, shape index: {}]
  %s3 = inlined_call_operand.hbm [shape: bf16[512,512], index: 3, kind: input, shape index: {}]
  %s4 = inlined_call_operand.vmem [shape: f32[1,512], index: 4, kind: input, shape index: {}]
  %s5 = inlined_call_operand.hbm [shape: bf16[512,256], index: 5, kind: input, shape index: {}]
  %s6 = inlined_call_operand.vmem [shape: f32[1,256], index: 6, kind: input, shape index: {}]
  %s7 = inlined_call_operand.hbm [shape: bf16[256,128], index: 7, kind: input, shape index: {}]
  %s8 = inlined_call_operand.vmem [shape: f32[1,128], index: 8, kind: input, shape index: {}]
  %s9 = inlined_call_operand.hbm [shape: f32[8,128], index: 9, kind: output, shape index: {}]
  %s10 = sld [smem:[#allocation0]]
  $region97: #{tpu_custom_call.1} parent=0
    _
  %s12 = ssub.s32 1, %s10
  %s13 = scalar_select 0, %s12, %s10
  $region1: #{tpu_custom_call.1} parent=0
    #allocation3 [shape = 'u8[8192]{0}', space=vmem, size = 0x2000, scoped, tag = 'input window, operand 0']
    #allocation4 [shape = 's32[2]{0}', space=sflag, size = 0x8, scoped, tag = 'scoped memory for tpu_custom_call.1']
    #allocation5 [shape = 's32[2]{0}', space=sflag, size = 0x8, scoped, tag = 'scoped memory for tpu_custom_call.1']
    #allocation6 [shape = 'u8[524288]{0}', space=vmem, size = 0x80000, scoped, tag = 'input window, operand 1']
    #allocation7 [shape = 's32[2]{0}', space=sflag, size = 0x8, scoped, tag = 'scoped memory for tpu_custom_call.1']
    #allocation8 [shape = 'u8[524288]{0}', space=vmem, size = 0x80000, scoped, tag = 'input window, operand 3, single buffered']
    #allocation9 [shape = 'u8[262144]{0}', space=vmem, size = 0x40000, scoped, tag = 'input window, operand 5, single buffered']
    #allocation10 [shape = 's32[1]{0}', space=sflag, size = 0x4, scoped, tag = 'scoped memory for tpu_custom_call.1']
    #allocation11 [shape = 'u8[65536]{0}', space=vmem, size = 0x10000, scoped, tag = 'input window, operand 7, single buffered']
    #allocation12 [shape = 'u8[4096]{0}', space=vmem, size = 0x1000, scoped, tag = 'output window, operand 0, single buffered']
    %14 = vsyncpa [#allocation4], 0
    %s15 = scalar_lea.sflag [#allocation4], 1
    %16 = vsyncpa %s15, 0
    %17 = vsyncpa [#allocation7], 0
    %s18 = scalar_lea.sflag [#allocation7], 1
    %19 = vsyncpa %s18, 0
    %20 = vsyncpa [#allocation10], 0
    %21 = vsyncpa [#allocation5], 0
    loop: start=0, step=1, limit=5
    $region2: #{tpu_custom_call.1} parent=1 // loop_pre_header
      _
    $region3: #{tpu_custom_call.1} parent=1 // loop_header
      %s23 = sphi 0, %s27
      %p24 = scmp.ge.s32.totalorder %s23, 5
      %s30 = sphi 0, %s42
      %s31 = sphi 0, %s38
      %s32 = sphi 0, %s30
      %s33 = sphi 0, %s31
      %s34 = sphi 0, %s32
      %s35 = sphi 0, %s33
      %s47 = sphi 0, %s49
      %s50 = sphi 0, %s47
      %s51 = sphi 0, %s50
      %s67 = sphi 0, %s51
      %s73 = sphi 0, %s75
      %s76 = sphi 0, %s73
      %s77 = sphi 0, %s76
      %s93 = sphi 0, %s77
      %s97 = sphi 0, %s97
      %s99 = sphi 0, %s97
      %s100 = sphi 0, %s99
      %s114 = sphi 0, %s100
      %s118 = sphi 0, %s118
      %s120 = sphi 0, %s118
      %s121 = sphi 0, %s120
      %s135 = sphi 0, %s121
      %s139 = sphi 0, %s139
      %s141 = sphi 0, %s139
      %s142 = sphi 0, %s141
      %s156 = sphi 0, %s142
      %s160 = sphi 0, %s160
      %s162 = sphi 0, %s160
      %s163 = sphi 0, %s162
      %s177 = sphi 0, %s163
      %s181 = sphi 0, %s181
      %s183 = sphi 0, %s181
      %s184 = sphi 0, %s183
      %s198 = sphi 0, %s184
      %s202 = sphi 0, %s202
      %s204 = sphi 0, %s202
      %s205 = sphi 0, %s204
      %s219 = sphi 0, %s205
      %s223 = sphi 0, %s223
      %s225 = sphi 0, %s223
      %s226 = sphi 0, %s225
      %s240 = sphi 0, %s226
      %s246 = sphi 0, %s248
      %s249 = sphi 0, %s246
      %s250 = sphi 0, %s249
      %s266 = sphi 0, %s250
    $region4: #{tpu_custom_call.1} parent=1 // loop_header_branch
      %26 = sbr.rel (%p24) target = $region8
    $region5: #{tpu_custom_call.1} parent=1 // loop_body
      %s28 = ssub.s32 %s23, 1
      %s29 = ssub.s32 %s23, 2
      %s36 = sadd.s32 1, %s31
      %p37 = scmp.ge.s32.totalorder %s36, 3
      %s38 = scalar_select %p37, 0, %s36
      %s39 = sadd.s32 1, %s30
      %s40 = scalar_select %p37, %s39, %s30
      %p41 = scmp.ge.s32.totalorder %s40, 1
      %s42 = scalar_select %p41, 0, %s40
      %s43 = ssub.s32 %s30, %s42
      %s44 = ssub.s32 %s31, %s38
      %s45 = sor.u32 %s43, %s44
      %p46 = scmp.eq.s32.totalorder %s45, 0
      %s48 = sadd.s32 %s47, 1
      %s49 = scalar_select %p46, %s47, %s48
      %p52 = pneg %p46
      %p53 = scmp.eq.s32.totalorder %s23, 2
      %p54 = por %p52, %p53
      %p55 = scmp.ne.s32.totalorder %s47, %s50
      %p56 = scmp.eq.s32.totalorder %s23, 0
      %p57 = por %p55, %p56
      %p58 = scmp.ne.s32.totalorder %s47, %s50
      %p59 = scmp.eq.s32.totalorder %s28, 2
      %p60 = por %p58, %p59
      %p61 = scmp.ne.s32.totalorder %s50, %s51
      %p62 = scmp.eq.s32.totalorder %s28, 0
      %p63 = por %p61, %p62
      %p64 = scmp.ne.s32.totalorder %s50, %s51
      %p65 = scmp.eq.s32.totalorder %s29, 2
      %p66 = por %p64, %p65
      %p68 = scmp.ne.s32.totalorder %s51, %s67
      %p69 = scmp.eq.s32.totalorder %s29, 0
      %p70 = por %p68, %p69
      %s71 = ssub.s32 %s31, %s38
      %p72 = scmp.eq.s32.totalorder %s71, 0
      %s74 = sadd.s32 %s73, 1
      %s75 = scalar_select %p72, %s73, %s74
      %p78 = pneg %p72
      %p79 = scmp.eq.s32.totalorder %s23, 2
      %p80 = por %p78, %p79
      %p81 = scmp.ne.s32.totalorder %s73, %s76
      %p82 = scmp.eq.s32.totalorder %s23, 0
      %p83 = por %p81, %p82
      %p84 = scmp.ne.s32.totalorder %s73, %s76
      %p85 = scmp.eq.s32.totalorder %s28, 2
      %p86 = por %p84, %p85
      %p87 = scmp.ne.s32.totalorder %s76, %s77
      %p88 = scmp.eq.s32.totalorder %s28, 0
      %p89 = por %p87, %p88
      %p90 = scmp.ne.s32.totalorder %s76, %s77
      %p91 = scmp.eq.s32.totalorder %s29, 2
      %p92 = por %p90, %p91
      %p94 = scmp.ne.s32.totalorder %s77, %s93
      %p95 = scmp.eq.s32.totalorder %s29, 0
      %p96 = por %p94, %p95
      %s98 = sadd.s32 %s97, 1
      %p101 = scmp.eq.s32.totalorder %s23, 2
      %p102 = scmp.ne.s32.totalorder %s97, %s99
      %p103 = scmp.eq.s32.totalorder %s23, 0
      %p104 = por %p102, %p103
      %p105 = scmp.ne.s32.totalorder %s97, %s99
      %p106 = scmp.eq.s32.totalorder %s28, 2
      %p107 = por %p105, %p106
      %p108 = scmp.ne.s32.totalorder %s99, %s100
      %p109 = scmp.eq.s32.totalorder %s28, 0
      %p110 = por %p108, %p109
      %p111 = scmp.ne.s32.totalorder %s99, %s100
      %p112 = scmp.eq.s32.totalorder %s29, 2
      %p113 = por %p111, %p112
      %p115 = scmp.ne.s32.totalorder %s100, %s114
      %p116 = scmp.eq.s32.totalorder %s29, 0
      %p117 = por %p115, %p116
      %s119 = sadd.s32 %s118, 1
      %p122 = scmp.eq.s32.totalorder %s23, 2
      %p123 = scmp.ne.s32.totalorder %s118, %s120
      %p124 = scmp.eq.s32.totalorder %s23, 0
      %p125 = por %p123, %p124
      %p126 = scmp.ne.s32.totalorder %s118, %s120
      %p127 = scmp.eq.s32.totalorder %s28, 2
      %p128 = por %p126, %p127
      %p129 = scmp.ne.s32.totalorder %s120, %s121
      %p130 = scmp.eq.s32.totalorder %s28, 0
      %p131 = por %p129, %p130
      %p132 = scmp.ne.s32.totalorder %s120, %s121
      %p133 = scmp.eq.s32.totalorder %s29, 2
      %p134 = por %p132, %p133
      %p136 = scmp.ne.s32.totalorder %s121, %s135
      %p137 = scmp.eq.s32.totalorder %s29, 0
      %p138 = por %p136, %p137
      %s140 = sadd.s32 %s139, 1
      %p143 = scmp.eq.s32.totalorder %s23, 2
      %p144 = scmp.ne.s32.totalorder %s139, %s141
      %p145 = scmp.eq.s32.totalorder %s23, 0
      %p146 = por %p144, %p145
      %p147 = scmp.ne.s32.totalorder %s139, %s141
      %p148 = scmp.eq.s32.totalorder %s28, 2
      %p149 = por %p147, %p148
      %p150 = scmp.ne.s32.totalorder %s141, %s142
      %p151 = scmp.eq.s32.totalorder %s28, 0
      %p152 = por %p150, %p151
      %p153 = scmp.ne.s32.totalorder %s141, %s142
      %p154 = scmp.eq.s32.totalorder %s29, 2
      %p155 = por %p153, %p154
      %p157 = scmp.ne.s32.totalorder %s142, %s156
      %p158 = scmp.eq.s32.totalorder %s29, 0
      %p159 = por %p157, %p158
      %s161 = sadd.s32 %s160, 1
      %p164 = scmp.eq.s32.totalorder %s23, 2
      %p165 = scmp.ne.s32.totalorder %s160, %s162
      %p166 = scmp.eq.s32.totalorder %s23, 0
      %p167 = por %p165, %p166
      %p168 = scmp.ne.s32.totalorder %s160, %s162
      %p169 = scmp.eq.s32.totalorder %s28, 2
      %p170 = por %p168, %p169
      %p171 = scmp.ne.s32.totalorder %s162, %s163
      %p172 = scmp.eq.s32.totalorder %s28, 0
      %p173 = por %p171, %p172
      %p174 = scmp.ne.s32.totalorder %s162, %s163
      %p175 = scmp.eq.s32.totalorder %s29, 2
      %p176 = por %p174, %p175
      %p178 = scmp.ne.s32.totalorder %s163, %s177
      %p179 = scmp.eq.s32.totalorder %s29, 0
      %p180 = por %p178, %p179
      %s182 = sadd.s32 %s181, 1
      %p185 = scmp.eq.s32.totalorder %s23, 2
      %p186 = scmp.ne.s32.totalorder %s181, %s183
      %p187 = scmp.eq.s32.totalorder %s23, 0
      %p188 = por %p186, %p187
      %p189 = scmp.ne.s32.totalorder %s181, %s183
      %p190 = scmp.eq.s32.totalorder %s28, 2
      %p191 = por %p189, %p190
      %p192 = scmp.ne.s32.totalorder %s183, %s184
      %p193 = scmp.eq.s32.totalorder %s28, 0
      %p194 = por %p192, %p193
      %p195 = scmp.ne.s32.totalorder %s183, %s184
      %p196 = scmp.eq.s32.totalorder %s29, 2
      %p197 = por %p195, %p196
      %p199 = scmp.ne.s32.totalorder %s184, %s198
      %p200 = scmp.eq.s32.totalorder %s29, 0
      %p201 = por %p199, %p200
      %s203 = sadd.s32 %s202, 1
      %p206 = scmp.eq.s32.totalorder %s23, 2
      %p207 = scmp.ne.s32.totalorder %s202, %s204
      %p208 = scmp.eq.s32.totalorder %s23, 0
      %p209 = por %p207, %p208
      %p210 = scmp.ne.s32.totalorder %s202, %s204
      %p211 = scmp.eq.s32.totalorder %s28, 2
      %p212 = por %p210, %p211
      %p213 = scmp.ne.s32.totalorder %s204, %s205
      %p214 = scmp.eq.s32.totalorder %s28, 0
      %p215 = por %p213, %p214
      %p216 = scmp.ne.s32.totalorder %s204, %s205
      %p217 = scmp.eq.s32.totalorder %s29, 2
      %p218 = por %p216, %p217
      %p220 = scmp.ne.s32.totalorder %s205, %s219
      %p221 = scmp.eq.s32.totalorder %s29, 0
      %p222 = por %p220, %p221
      %s224 = sadd.s32 %s223, 1
      %p227 = scmp.eq.s32.totalorder %s23, 2
      %p228 = scmp.ne.s32.totalorder %s223, %s225
      %p229 = scmp.eq.s32.totalorder %s23, 0
      %p230 = por %p228, %p229
      %p231 = scmp.ne.s32.totalorder %s223, %s225
      %p232 = scmp.eq.s32.totalorder %s28, 2
      %p233 = por %p231, %p232
      %p234 = scmp.ne.s32.totalorder %s225, %s226
      %p235 = scmp.eq.s32.totalorder %s28, 0
      %p236 = por %p234, %p235
      %p237 = scmp.ne.s32.totalorder %s225, %s226
      %p238 = scmp.eq.s32.totalorder %s29, 2
      %p239 = por %p237, %p238
      %p241 = scmp.ne.s32.totalorder %s226, %s240
      %p242 = scmp.eq.s32.totalorder %s29, 0
      %p243 = por %p241, %p242
      %s244 = ssub.s32 %s30, %s42
      %p245 = scmp.eq.s32.totalorder %s244, 0
      %s247 = sadd.s32 %s246, 1
      %s248 = scalar_select %p245, %s246, %s247
      %p251 = pneg %p245
      %p252 = scmp.eq.s32.totalorder %s23, 2
      %p253 = por %p251, %p252
      %p254 = scmp.ne.s32.totalorder %s246, %s249
      %p255 = scmp.eq.s32.totalorder %s23, 0
      %p256 = por %p254, %p255
      %p257 = scmp.ne.s32.totalorder %s246, %s249
      %p258 = scmp.eq.s32.totalorder %s28, 2
      %p259 = por %p257, %p258
      %p260 = scmp.ne.s32.totalorder %s249, %s250
      %p261 = scmp.eq.s32.totalorder %s28, 0
      %p262 = por %p260, %p261
      %p263 = scmp.ne.s32.totalorder %s249, %s250
      %p264 = scmp.eq.s32.totalorder %s29, 2
      %p265 = por %p263, %p264
      %p267 = scmp.ne.s32.totalorder %s250, %s266
      %p268 = scmp.eq.s32.totalorder %s29, 0
      %p269 = por %p267, %p268
      %p270 = scmp.le.s32.totalorder 1, %s23
      %p271 = scmp.lt.s32.totalorder %s23, 4
      %p272 = pnand %p270, %p271
      %p273 = pneg %p272
      // Predicated region
      $region9: #{tpu_custom_call.1} parent=5 // pred_check
        _
      $region10: #{tpu_custom_call.1} parent=5 // pred_check_branch
        %275 = sbr.rel (%p272) target = $region12
      $region11: #{tpu_custom_call.1} parent=5 // pred_region
        %s276 = ssub.s32 %s23, 1
        // Predicated region
        $region13: #{tpu_custom_call.1} parent=11 // pred_check
          %p277 = pneg %p110
        $region14: #{tpu_custom_call.1} parent=11 // pred_check_branch
          %279 = sbr.rel (%p277) target = $region16
        $region15: #{tpu_custom_call.1} parent=11 // pred_region
          _
        $region16: #{tpu_custom_call.1} parent=11 // pred_fallthru
          _
        // Predicated region
        $region17: #{tpu_custom_call.1} parent=11 // pred_check
          %p280 = pneg %p131
        $region18: #{tpu_custom_call.1} parent=11 // pred_check_branch
          %282 = sbr.rel (%p280) target = $region20
        $region19: #{tpu_custom_call.1} parent=11 // pred_region
          %s284 = ssub.s32 16384, 16384
          %285 = vsyncadd [#allocation7], %s284
          %s286 = sshll.u32 [#allocation8], 4
          %s287 = int_to_ptr.vmem [resolvable:$true] %s286
          %292 = dma.hbm_to_vmem [thread:$0]  %s3, 16384, %s287, [#allocation7], 256, 256, 16
        $region20: #{tpu_custom_call.1} parent=11 // pred_fallthru
          _
        // Predicated region
        $region21: #{tpu_custom_call.1} parent=11 // pred_check
          %p293 = pneg %p152
        $region22: #{tpu_custom_call.1} parent=11 // pred_check_branch
          %295 = sbr.rel (%p293) target = $region24
        $region23: #{tpu_custom_call.1} parent=11 // pred_region
          _
        $region24: #{tpu_custom_call.1} parent=11 // pred_fallthru
          _
        // Predicated region
        $region25: #{tpu_custom_call.1} parent=11 // pred_check
          %p296 = pneg %p173
        $region26: #{tpu_custom_call.1} parent=11 // pred_check_branch
          %298 = sbr.rel (%p296) target = $region28
        $region27: #{tpu_custom_call.1} parent=11 // pred_region
          %s300 = ssub.s32 8192, 8192
          %301 = vsyncadd [#allocation10], %s300
          %s302 = sshll.u32 [#allocation9], 4
          %s303 = int_to_ptr.vmem [resolvable:$true] %s302
          %308 = dma.hbm_to_vmem [thread:$0]  %s5, 8192, %s303, [#allocation10], 128, 128, 8
        $region28: #{tpu_custom_call.1} parent=11 // pred_fallthru
          _
        // Predicated region
        $region29: #{tpu_custom_call.1} parent=11 // pred_check
          %p309 = pneg %p194
        $region30: #{tpu_custom_call.1} parent=11 // pred_check_branch
          %311 = sbr.rel (%p309) target = $region32
        $region31: #{tpu_custom_call.1} parent=11 // pred_region
          _
        $region32: #{tpu_custom_call.1} parent=11 // pred_fallthru
          _
        // Predicated region
        $region33: #{tpu_custom_call.1} parent=11 // pred_check
          %p312 = pneg %p215
        $region34: #{tpu_custom_call.1} parent=11 // pred_check_branch
          %314 = sbr.rel (%p312) target = $region36
        $region35: #{tpu_custom_call.1} parent=11 // pred_region
          %s316 = ssub.s32 2048, 2048
          %317 = vsyncadd [#allocation10], %s316
          %s318 = sshll.u32 [#allocation11], 4
          %s319 = int_to_ptr.vmem [resolvable:$true] %s318
          %324 = dma.hbm_to_vmem [thread:$0]  %s7, 2048, %s319, [#allocation10], 64, 64, 4
        $region36: #{tpu_custom_call.1} parent=11 // pred_fallthru
          _
        // Predicated region
        $region37: #{tpu_custom_call.1} parent=11 // pred_check
          %p325 = pneg %p236
        $region38: #{tpu_custom_call.1} parent=11 // pred_check_branch
          %327 = sbr.rel (%p325) target = $region40
        $region39: #{tpu_custom_call.1} parent=11 // pred_region
          _
        $region40: #{tpu_custom_call.1} parent=11 // pred_fallthru
          _
      $region12: #{tpu_custom_call.1} parent=5 // pred_fallthru
        _
      %p328 = scmp.lt.s32.totalorder %s23, 3
      // Predicated region
      $region41: #{tpu_custom_call.1} parent=5 // pred_check
        %p329 = pneg %p328
      $region42: #{tpu_custom_call.1} parent=5 // pred_check_branch
        %331 = sbr.rel (%p329) target = $region44
      $region43: #{tpu_custom_call.1} parent=5 // pred_region
        // Predicated region
        $region45: #{tpu_custom_call.1} parent=43 // pred_check
          %p332 = pneg %p57
        $region46: #{tpu_custom_call.1} parent=43 // pred_check_branch
          %334 = sbr.rel (%p332) target = $region48
        $region47: #{tpu_custom_call.1} parent=43 // pred_region
          %s335 = sand.u32 %s47, 1
          %s336 = scalar_lea.sflag [#allocation4], %s335
          %s337 = sand.u32 %s47, 1
          %s338 = smul.addr %s337, 8
          %s339 = scalar_lea.vmem [#allocation3], %s338
          %s340 = smul.u32 2, %s31
          %s342 = ssub.s32 128, 128
          %343 = vsyncadd %s336, %s342
          %s344 = smul.addr %s30, 6
          %s345 = sadd.s32 %s340, %s344
          %s346 = smul.addr %s345, 64
          %s347 = scalar_lea.hbm %s0, %s346
          %s349 = sshll.u32 %s339, 4
          %s350 = int_to_ptr.vmem [resolvable:$true] %s349
          %352 = dma.hbm_to_vmem [thread:$0]  %s347, 128, %s350, %s336
        $region48: #{tpu_custom_call.1} parent=43 // pred_fallthru
          _
        // Predicated region
        $region49: #{tpu_custom_call.1} parent=43 // pred_check
          %p353 = pneg %p83
        $region50: #{tpu_custom_call.1} parent=43 // pred_check_branch
          %355 = sbr.rel (%p353) target = $region52
        $region51: #{tpu_custom_call.1} parent=43 // pred_region
          %s356 = sand.u32 %s23, 1
          %s357 = scalar_lea.sflag [#allocation7], %s356
          %s358 = sand.u32 %s73, 1
          %s359 = smul.addr %s358, 512
          %s360 = scalar_lea.vmem [#allocation6], %s359
          %s361 = smul.u32 32, %s31
          %s363 = ssub.s32 8192, 8192
          %364 = vsyncadd %s357, %s363
          %s365 = smul.addr %s361, 4
          %s366 = smul.addr %s365, 64
          %s367 = scalar_lea.hbm %s1, %s366
          %s368 = sshll.u32 %s360, 4
          %s369 = int_to_ptr.vmem [resolvable:$true] %s368
          %374 = dma.hbm_to_vmem [thread:$0]  %s367, 8192, %s369, %s357, 256, 256, 16
        $region52: #{tpu_custom_call.1} parent=43 // pred_fallthru
          _
      $region44: #{tpu_custom_call.1} parent=5 // pred_fallthru
        _
      %p375 = scmp.le.s32.totalorder 1, %s23
      %p376 = scmp.lt.s32.totalorder %s23, 4
      %p377 = pnand %p375, %p376
      %p378 = pneg %p377
      // Predicated region
      $region53: #{tpu_custom_call.1} parent=5 // pred_check
        _
      $region54: #{tpu_custom_call.1} parent=5 // pred_check_branch
        %380 = sbr.rel (%p377) target = $region56
      $region55: #{tpu_custom_call.1} parent=5 // pred_region
        %s381 = ssub.s32 %s23, 1
        %s382 = sand.u32 %s50, 1
        %s383 = scalar_lea.sflag [#allocation4], %s382
        %s384 = sand.u32 %s50, 1
        %s385 = smul.addr %s384, 8
        %s386 = scalar_lea.vmem [#allocation3], %s385
        // Predicated region
        $region57: #{tpu_custom_call.1} parent=55 // pred_check
          %p387 = pneg %p63
        $region58: #{tpu_custom_call.1} parent=55 // pred_check_branch
          %389 = sbr.rel (%p387) target = $region60
        $region59: #{tpu_custom_call.1} parent=55 // pred_region
          %390 = dma.done %s383, 128
        $region60: #{tpu_custom_call.1} parent=55 // pred_fallthru
          _
        %s391 = sand.u32 %s28, 1
        %s392 = scalar_lea.sflag [#allocation7], %s391
        %s393 = sand.u32 %s76, 1
        %s394 = smul.addr %s393, 512
        %s395 = scalar_lea.vmem [#allocation6], %s394
        // Predicated region
        $region61: #{tpu_custom_call.1} parent=55 // pred_check
          %p396 = pneg %p89
        $region62: #{tpu_custom_call.1} parent=55 // pred_check_branch
          %398 = sbr.rel (%p396) target = $region64
        $region63: #{tpu_custom_call.1} parent=55 // pred_region
          %399 = dma.done %s392, 8192
        $region64: #{tpu_custom_call.1} parent=55 // pred_fallthru
          _
        // Predicated region
        $region65: #{tpu_custom_call.1} parent=55 // pred_check
          %p400 = pneg %p131
        $region66: #{tpu_custom_call.1} parent=55 // pred_check_branch
          %402 = sbr.rel (%p400) target = $region68
        $region67: #{tpu_custom_call.1} parent=55 // pred_region
          %403 = dma.done [#allocation7], 16384
        $region68: #{tpu_custom_call.1} parent=55 // pred_fallthru
          _
        // Predicated region
        $region69: #{tpu_custom_call.1} parent=55 // pred_check
          %p404 = pneg %p173
        $region70: #{tpu_custom_call.1} parent=55 // pred_check_branch
          %406 = sbr.rel (%p404) target = $region72
        $region71: #{tpu_custom_call.1} parent=55 // pred_region
          %407 = dma.done [#allocation10], 8192
        $region72: #{tpu_custom_call.1} parent=55 // pred_fallthru
          _
        // Predicated region
        $region73: #{tpu_custom_call.1} parent=55 // pred_check
          %p408 = pneg %p215
        $region74: #{tpu_custom_call.1} parent=55 // pred_check_branch
          %410 = sbr.rel (%p408) target = $region76
        $region75: #{tpu_custom_call.1} parent=55 // pred_region
          %411 = dma.done [#allocation10], 2048
        $region76: #{tpu_custom_call.1} parent=55 // pred_fallthru
          _
        %s412 = sand.u32 %s50, 1
        %s413 = scalar_lea.sflag [#allocation4], %s412
        %s414 = sand.u32 %s50, 1
        %s415 = smul.addr %s414, 8
        %s416 = scalar_lea.vmem [#allocation3], %s415
        %p417 = pneg %p63
        %p418 = pneg %p60
        %s419 = sand.u32 %s28, 1
        %s420 = scalar_lea.sflag [#allocation7], %s419
        %s421 = sand.u32 %s76, 1
        %s422 = smul.addr %s421, 512
        %s423 = scalar_lea.vmem [#allocation6], %s422
        %p424 = pneg %p89
        %p425 = pneg %p86
        %p426 = pneg %p110
        %p427 = pneg %p107
        %p428 = pneg %p131
        %p429 = pneg %p128
        %p430 = pneg %p152
        %p431 = pneg %p149
        %p432 = pneg %p173
        %p433 = pneg %p170
        %p434 = pneg %p194
        %p435 = pneg %p191
        %p436 = pneg %p215
        %p437 = pneg %p212
        %p438 = pneg %p236
        %p439 = pneg %p233
        %p440 = pneg %p262
        %p441 = pneg %p259
        %s442 = smul.u32 2, %s33
        %s443 = smul.u32 32, %s33
        %p445 = scmp.eq.s32.totalorder %s33, 0
        // Predicated region
        $region77: #{tpu_custom_call.1} parent=55 // pred_check
          %p446 = pneg %p445
        $region78: #{tpu_custom_call.1} parent=55 // pred_check_branch
          %448 = sbr.rel (%p446) target = $region80
        $region79: #{tpu_custom_call.1} parent=55 // pred_region
          %449 = vst [vmem:[#allocation2] sm:$0xff] 0.0
          %450 = vst [vmem:[#allocation2 + $0x8] sm:$0xff] 0.0
          %451 = vst [vmem:[#allocation2 + $0x10] sm:$0xff] 0.0
          %452 = vst [vmem:[#allocation2 + $0x18] sm:$0xff] 0.0
        $region80: #{tpu_custom_call.1} parent=55 // pred_fallthru
          _
        %v453 = vld [vmem:[#allocation2] sm:$0xff]
        %v454 = vld [vmem:[#allocation2 + $0x8] sm:$0xff]
        %v455 = vld [vmem:[#allocation2 + $0x10] sm:$0xff]
        %v456 = vld [vmem:[#allocation2 + $0x18] sm:$0xff]
        %v457 = vld [vmem:[%s386] sm:$0xff]
        %v458 = vld [vmem:[%s395] sm:$0xff]
        %v459 = vld [vmem:[%s395 + $0x8] sm:$0xff]
        %v460 = vld [vmem:[%s395 + $0x10] sm:$0xff]
        %v461 = vld [vmem:[%s395 + $0x18] sm:$0xff]
        %v462 = vld [vmem:[%s395 + $0x20] sm:$0xff]
        %v463 = vld [vmem:[%s395 + $0x28] sm:$0xff]
        %v464 = vld [vmem:[%s395 + $0x30] sm:$0xff]
        %v465 = vld [vmem:[%s395 + $0x38] sm:$0xff]
        %v466 = vld [vmem:[%s395 + $0x40] sm:$0xff]
        %v467 = vld [vmem:[%s395 + $0x48] sm:$0xff]
        %v468 = vld [vmem:[%s395 + $0x50] sm:$0xff]
        %v469 = vld [vmem:[%s395 + $0x58] sm:$0xff]
        %v470 = vld [vmem:[%s395 + $0x60] sm:$0xff]
        %v471 = vld [vmem:[%s395 + $0x68] sm:$0xff]
        %v472 = vld [vmem:[%s395 + $0x70] sm:$0xff]
        %v473 = vld [vmem:[%s395 + $0x78] sm:$0xff]
        %v474 = vld [vmem:[%s395 + $0x80] sm:$0xff]
        %v475 = vld [vmem:[%s395 + $0x88] sm:$0xff]
        %v476 = vld [vmem:[%s395 + $0x90] sm:$0xff]
        %v477 = vld [vmem:[%s395 + $0x98] sm:$0xff]
        %v478 = vld [vmem:[%s395 + $0xa0] sm:$0xff]
        %v479 = vld [vmem:[%s395 + $0xa8] sm:$0xff]
        %v480 = vld [vmem:[%s395 + $0xb0] sm:$0xff]
        %v481 = vld [vmem:[%s395 + $0xb8] sm:$0xff]
        %v482 = vld [vmem:[%s395 + $0xc0] sm:$0xff]
        %v483 = vld [vmem:[%s395 + $0xc8] sm:$0xff]
        %v484 = vld [vmem:[%s395 + $0xd0] sm:$0xff]
        %v485 = vld [vmem:[%s395 + $0xd8] sm:$0xff]
        %v486 = vld [vmem:[%s395 + $0xe0] sm:$0xff]
        %v487 = vld [vmem:[%s395 + $0xe8] sm:$0xff]
        %v488 = vld [vmem:[%s395 + $0xf0] sm:$0xff]
        %v489 = vld [vmem:[%s395 + $0xf8] sm:$0xff]
        %v490 = vld [vmem:[%s395 + $0x100] sm:$0xff]
        %v491 = vld [vmem:[%s395 + $0x108] sm:$0xff]
        %v492 = vld [vmem:[%s395 + $0x110] sm:$0xff]
        %v493 = vld [vmem:[%s395 + $0x118] sm:$0xff]
        %v494 = vld [vmem:[%s395 + $0x120] sm:$0xff]
        %v495 = vld [vmem:[%s395 + $0x128] sm:$0xff]
        %v496 = vld [vmem:[%s395 + $0x130] sm:$0xff]
        %v497 = vld [vmem:[%s395 + $0x138] sm:$0xff]
        %v498 = vld [vmem:[%s395 + $0x140] sm:$0xff]
        %v499 = vld [vmem:[%s395 + $0x148] sm:$0xff]
        %v500 = vld [vmem:[%s395 + $0x150] sm:$0xff]
        %v501 = vld [vmem:[%s395 + $0x158] sm:$0xff]
        %v502 = vld [vmem:[%s395 + $0x160] sm:$0xff]
        %v503 = vld [vmem:[%s395 + $0x168] sm:$0xff]
        %v504 = vld [vmem:[%s395 + $0x170] sm:$0xff]
        %v505 = vld [vmem:[%s395 + $0x178] sm:$0xff]
        %v506 = vld [vmem:[%s395 + $0x180] sm:$0xff]
        %v507 = vld [vmem:[%s395 + $0x188] sm:$0xff]
        %v508 = vld [vmem:[%s395 + $0x190] sm:$0xff]
        %v509 = vld [vmem:[%s395 + $0x198] sm:$0xff]
        %v510 = vld [vmem:[%s395 + $0x1a0] sm:$0xff]
        %v511 = vld [vmem:[%s395 + $0x1a8] sm:$0xff]
        %v512 = vld [vmem:[%s395 + $0x1b0] sm:$0xff]
        %v513 = vld [vmem:[%s395 + $0x1b8] sm:$0xff]
        %v514 = vld [vmem:[%s395 + $0x1c0] sm:$0xff]
        %v515 = vld [vmem:[%s395 + $0x1c8] sm:$0xff]
        %v516 = vld [vmem:[%s395 + $0x1d0] sm:$0xff]
        %v517 = vld [vmem:[%s395 + $0x1d8] sm:$0xff]
        %v518 = vld [vmem:[%s395 + $0x1e0] sm:$0xff]
        %v519 = vld [vmem:[%s395 + $0x1e8] sm:$0xff]
        %v520 = vld [vmem:[%s395 + $0x1f0] sm:$0xff]
        %v521 = vld [vmem:[%s395 + $0x1f8] sm:$0xff]
        %v523 = vunpack.c.l.b16 %v457
        %v524 = vunpack.c.h.b16 %v457
        %v525 = vpack.c.b16 %v523, %v523
        %v526 = vpack.c.b16 %v524, %v524
        %v593 = vunpack.c.l.b16 %v458
        %v594 = vunpack.c.h.b16 %v458
        %v595 = vunpack.c.l.b16 %v459
        %v596 = vunpack.c.h.b16 %v459
        %v597 = vunpack.c.l.b16 %v460
        %v598 = vunpack.c.h.b16 %v460
        %v599 = vunpack.c.l.b16 %v461
        %v600 = vunpack.c.h.b16 %v461
        %v601 = vunpack.c.l.b16 %v462
        %v602 = vunpack.c.h.b16 %v462
        %v603 = vunpack.c.l.b16 %v463
        %v604 = vunpack.c.h.b16 %v463
        %v605 = vunpack.c.l.b16 %v464
        %v606 = vunpack.c.h.b16 %v464
        %v607 = vunpack.c.l.b16 %v465
        %v608 = vunpack.c.h.b16 %v465
        %v609 = vunpack.c.l.b16 %v466
        %v610 = vunpack.c.h.b16 %v466
        %v611 = vunpack.c.l.b16 %v467
        %v612 = vunpack.c.h.b16 %v467
        %v613 = vunpack.c.l.b16 %v468
        %v614 = vunpack.c.h.b16 %v468
        %v615 = vunpack.c.l.b16 %v469
        %v616 = vunpack.c.h.b16 %v469
        %v617 = vunpack.c.l.b16 %v470
        %v618 = vunpack.c.h.b16 %v470
        %v619 = vunpack.c.l.b16 %v471
        %v620 = vunpack.c.h.b16 %v471
        %v621 = vunpack.c.l.b16 %v472
        %v622 = vunpack.c.h.b16 %v472
        %v623 = vunpack.c.l.b16 %v473
        %v624 = vunpack.c.h.b16 %v473
        %v625 = vunpack.c.l.b16 %v474
        %v626 = vunpack.c.h.b16 %v474
        %v627 = vunpack.c.l.b16 %v475
        %v628 = vunpack.c.h.b16 %v475
        %v629 = vunpack.c.l.b16 %v476
        %v630 = vunpack.c.h.b16 %v476
        %v631 = vunpack.c.l.b16 %v477
        %v632 = vunpack.c.h.b16 %v477
        %v633 = vunpack.c.l.b16 %v478
        %v634 = vunpack.c.h.b16 %v478
        %v635 = vunpack.c.l.b16 %v479
        %v636 = vunpack.c.h.b16 %v479
        %v637 = vunpack.c.l.b16 %v480
        %v638 = vunpack.c.h.b16 %v480
        %v639 = vunpack.c.l.b16 %v481
        %v640 = vunpack.c.h.b16 %v481
        %v641 = vunpack.c.l.b16 %v482
        %v642 = vunpack.c.h.b16 %v482
        %v643 = vunpack.c.l.b16 %v483
        %v644 = vunpack.c.h.b16 %v483
        %v645 = vunpack.c.l.b16 %v484
        %v646 = vunpack.c.h.b16 %v484
        %v647 = vunpack.c.l.b16 %v485
        %v648 = vunpack.c.h.b16 %v485
        %v649 = vunpack.c.l.b16 %v486
        %v650 = vunpack.c.h.b16 %v486
        %v651 = vunpack.c.l.b16 %v487
        %v652 = vunpack.c.h.b16 %v487
        %v653 = vunpack.c.l.b16 %v488
        %v654 = vunpack.c.h.b16 %v488
        %v655 = vunpack.c.l.b16 %v489
        %v656 = vunpack.c.h.b16 %v489
        %v657 = vunpack.c.l.b16 %v490
        %v658 = vunpack.c.h.b16 %v490
        %v659 = vunpack.c.l.b16 %v491
        %v660 = vunpack.c.h.b16 %v491
        %v661 = vunpack.c.l.b16 %v492
        %v662 = vunpack.c.h.b16 %v492
        %v663 = vunpack.c.l.b16 %v493
        %v664 = vunpack.c.h.b16 %v493
        %v665 = vunpack.c.l.b16 %v494
        %v666 = vunpack.c.h.b16 %v494
        %v667 = vunpack.c.l.b16 %v495
        %v668 = vunpack.c.h.b16 %v495
        %v669 = vunpack.c.l.b16 %v496
        %v670 = vunpack.c.h.b16 %v496
        %v671 = vunpack.c.l.b16 %v497
        %v672 = vunpack.c.h.b16 %v497
        %v673 = vunpack.c.l.b16 %v498
        %v674 = vunpack.c.h.b16 %v498
        %v675 = vunpack.c.l.b16 %v499
        %v676 = vunpack.c.h.b16 %v499
        %v677 = vunpack.c.l.b16 %v500
        %v678 = vunpack.c.h.b16 %v500
        %v679 = vunpack.c.l.b16 %v501
        %v680 = vunpack.c.h.b16 %v501
        %v681 = vunpack.c.l.b16 %v502
        %v682 = vunpack.c.h.b16 %v502
        %v683 = vunpack.c.l.b16 %v503
        %v684 = vunpack.c.h.b16 %v503
        %v685 = vunpack.c.l.b16 %v504
        %v686 = vunpack.c.h.b16 %v504
        %v687 = vunpack.c.l.b16 %v505
        %v688 = vunpack.c.h.b16 %v505
        %v689 = vunpack.c.l.b16 %v506
        %v690 = vunpack.c.h.b16 %v506
        %v691 = vunpack.c.l.b16 %v507
        %v692 = vunpack.c.h.b16 %v507
        %v693 = vunpack.c.l.b16 %v508
        %v694 = vunpack.c.h.b16 %v508
        %v695 = vunpack.c.l.b16 %v509
        %v696 = vunpack.c.h.b16 %v509
        %v697 = vunpack.c.l.b16 %v510
        %v698 = vunpack.c.h.b16 %v510
        %v699 = vunpack.c.l.b16 %v511
        %v700 = vunpack.c.h.b16 %v511
        %v701 = vunpack.c.l.b16 %v512
        %v702 = vunpack.c.h.b16 %v512
        %v703 = vunpack.c.l.b16 %v513
        %v704 = vunpack.c.h.b16 %v513
        %v705 = vunpack.c.l.b16 %v514
        %v706 = vunpack.c.h.b16 %v514
        %v707 = vunpack.c.l.b16 %v515
        %v708 = vunpack.c.h.b16 %v515
        %v709 = vunpack.c.l.b16 %v516
        %v710 = vunpack.c.h.b16 %v516
        %v711 = vunpack.c.l.b16 %v517
        %v712 = vunpack.c.h.b16 %v517
        %v713 = vunpack.c.l.b16 %v518
        %v714 = vunpack.c.h.b16 %v518
        %v715 = vunpack.c.l.b16 %v519
        %v716 = vunpack.c.h.b16 %v519
        %v717 = vunpack.c.l.b16 %v520
        %v718 = vunpack.c.h.b16 %v520
        %v719 = vunpack.c.l.b16 %v521
        %v720 = vunpack.c.h.b16 %v521
        %v721 = vpack.c.b16 %v597, %v593
        %v722 = vpack.c.b16 %v598, %v594
        %v723 = vpack.c.b16 %v599, %v595
        %v724 = vpack.c.b16 %v600, %v596
        %v725 = vpack.c.b16 %v605, %v601
        %v726 = vpack.c.b16 %v606, %v602
        %v727 = vpack.c.b16 %v607, %v603
        %v728 = vpack.c.b16 %v608, %v604
        %v729 = vpack.c.b16 %v613, %v609
        %v730 = vpack.c.b16 %v614, %v610
        %v731 = vpack.c.b16 %v615, %v611
        %v732 = vpack.c.b16 %v616, %v612
        %v733 = vpack.c.b16 %v621, %v617
        %v734 = vpack.c.b16 %v622, %v618
        %v735 = vpack.c.b16 %v623, %v619
        %v736 = vpack.c.b16 %v624, %v620
        %v737 = vpack.c.b16 %v629, %v625
        %v738 = vpack.c.b16 %v630, %v626
        %v739 = vpack.c.b16 %v631, %v627
        %v740 = vpack.c.b16 %v632, %v628
        %v741 = vpack.c.b16 %v637, %v633
        %v742 = vpack.c.b16 %v638, %v634
        %v743 = vpack.c.b16 %v639, %v635
        %v744 = vpack.c.b16 %v640, %v636
        %v745 = vpack.c.b16 %v645, %v641
        %v746 = vpack.c.b16 %v646, %v642
        %v747 = vpack.c.b16 %v647, %v643
        %v748 = vpack.c.b16 %v648, %v644
        %v749 = vpack.c.b16 %v653, %v649
        %v750 = vpack.c.b16 %v654, %v650
        %v751 = vpack.c.b16 %v655, %v651
        %v752 = vpack.c.b16 %v656, %v652
        %v753 = vpack.c.b16 %v661, %v657
        %v754 = vpack.c.b16 %v662, %v658
        %v755 = vpack.c.b16 %v663, %v659
        %v756 = vpack.c.b16 %v664, %v660
        %v757 = vpack.c.b16 %v669, %v665
        %v758 = vpack.c.b16 %v670, %v666
        %v759 = vpack.c.b16 %v671, %v667
        %v760 = vpack.c.b16 %v672, %v668
        %v761 = vpack.c.b16 %v677, %v673
        %v762 = vpack.c.b16 %v678, %v674
        %v763 = vpack.c.b16 %v679, %v675
        %v764 = vpack.c.b16 %v680, %v676
        %v765 = vpack.c.b16 %v685, %v681
        %v766 = vpack.c.b16 %v686, %v682
        %v767 = vpack.c.b16 %v687, %v683
        %v768 = vpack.c.b16 %v688, %v684
        %v769 = vpack.c.b16 %v693, %v689
        %v770 = vpack.c.b16 %v694, %v690
        %v771 = vpack.c.b16 %v695, %v691
        %v772 = vpack.c.b16 %v696, %v692
        %v773 = vpack.c.b16 %v701, %v697
        %v774 = vpack.c.b16 %v702, %v698
        %v775 = vpack.c.b16 %v703, %v699
        %v776 = vpack.c.b16 %v704, %v700
        %v777 = vpack.c.b16 %v709, %v705
        %v778 = vpack.c.b16 %v710, %v706
        %v779 = vpack.c.b16 %v711, %v707
        %v780 = vpack.c.b16 %v712, %v708
        %v781 = vpack.c.b16 %v717, %v713
        %v782 = vpack.c.b16 %v718, %v714
        %v783 = vpack.c.b16 %v719, %v715
        %v784 = vpack.c.b16 %v720, %v716
        %849 = vmatprep.subr.bf16.mxu0 %v722
        %850 = vmatpush1.bf16.msra.mxu0 %v721
        %851 = vmatprep.subr.bf16.mxu0 %v726
        %852 = vmatpush1.bf16.msra.mxu0 %v725
        %853 = vmatprep.subr.bf16.mxu0 %v730
        %854 = vmatpush1.bf16.msra.mxu0 %v729
        %855 = vmatprep.subr.bf16.mxu0 %v734
        %856 = vmatpush1.bf16.msra.mxu0 %v733
        %857 = vmatprep.subr.bf16.mxu0 %v738
        %858 = vmatpush1.bf16.msra.mxu0 %v737
        %859 = vmatprep.subr.bf16.mxu0 %v742
        %860 = vmatpush1.bf16.msra.mxu0 %v741
        %861 = vmatprep.subr.bf16.mxu0 %v746
        %862 = vmatpush1.bf16.msra.mxu0 %v745
        %863 = vmatprep.subr.bf16.mxu0 %v750
        %864 = vmatpush1.bf16.msra.mxu0 %v749
        %865 = vmatprep.subr.bf16.mxu0 %v754
        %866 = vmatpush1.bf16.msra.mxu0 %v753
        %867 = vmatprep.subr.bf16.mxu0 %v758
        %868 = vmatpush1.bf16.msra.mxu0 %v757
        %869 = vmatprep.subr.bf16.mxu0 %v762
        %870 = vmatpush1.bf16.msra.mxu0 %v761
        %871 = vmatprep.subr.bf16.mxu0 %v766
        %872 = vmatpush1.bf16.msra.mxu0 %v765
        %873 = vmatprep.subr.bf16.mxu0 %v770
        %874 = vmatpush1.bf16.msra.mxu0 %v769
        %875 = vmatprep.subr.bf16.mxu0 %v774
        %876 = vmatpush1.bf16.msra.mxu0 %v773
        %877 = vmatprep.subr.bf16.mxu0 %v778
        %878 = vmatpush1.bf16.msra.mxu0 %v777
        %879 = vmatprep.subr.bf16.mxu0 %v782
        %880 = vmatpush1.bf16.msra.mxu0 %v781
        %881 = vmatprep.mubr.bf16.mxu0 %v526
        %882 = vmatmul.mubr.bf16.gmra.mrb[0].mxu0 %v525
        %v883 = vpop.f32.mrb[0].mxu0
        %v884 = vadd.f32 0.0, %v883
        %v885 = vpop.f32.mrb[0].mxu0
        %v886 = vadd.f32 0.0, %v885
        %v887 = vpop.f32.mrb[0].mxu0
        %v888 = vpop.f32.mrb[0].mxu0
        %889 = vdwg.mxu0
        %890 = vmatprep.subr.bf16.mxu0 %v724
        %891 = vmatpush1.bf16.msra.mxu0 %v723
        %892 = vmatprep.subr.bf16.mxu0 %v728
        %893 = vmatpush1.bf16.msra.mxu0 %v727
        %894 = vmatprep.subr.bf16.mxu0 %v732
        %895 = vmatpush1.bf16.msra.mxu0 %v731
        %896 = vmatprep.subr.bf16.mxu0 %v736
        %897 = vmatpush1.bf16.msra.mxu0 %v735
        %898 = vmatprep.subr.bf16.mxu0 %v740
        %899 = vmatpush1.bf16.msra.mxu0 %v739
        %900 = vmatprep.subr.bf16.mxu0 %v744
        %901 = vmatpush1.bf16.msra.mxu0 %v743
        %902 = vmatprep.subr.bf16.mxu0 %v748
        %903 = vmatpush1.bf16.msra.mxu0 %v747
        %904 = vmatprep.subr.bf16.mxu0 %v752
        %905 = vmatpush1.bf16.msra.mxu0 %v751
        %906 = vmatprep.subr.bf16.mxu0 %v756
        %907 = vmatpush1.bf16.msra.mxu0 %v755
        %908 = vmatprep.subr.bf16.mxu0 %v760
        %909 = vmatpush1.bf16.msra.mxu0 %v759
        %910 = vmatprep.subr.bf16.mxu0 %v764
        %911 = vmatpush1.bf16.msra.mxu0 %v763
        %912 = vmatprep.subr.bf16.mxu0 %v768
        %913 = vmatpush1.bf16.msra.mxu0 %v767
        %914 = vmatprep.subr.bf16.mxu0 %v772
        %915 = vmatpush1.bf16.msra.mxu0 %v771
        %916 = vmatprep.subr.bf16.mxu0 %v776
        %917 = vmatpush1.bf16.msra.mxu0 %v775
        %918 = vmatprep.subr.bf16.mxu0 %v780
        %919 = vmatpush1.bf16.msra.mxu0 %v779
        %920 = vmatprep.subr.bf16.mxu0 %v784
        %921 = vmatpush1.bf16.msra.mxu0 %v783
        %922 = vmatprep.mubr.bf16.mxu0 %v526
        %923 = vmatmul.mubr.bf16.gmra.mrb[0].mxu0 %v525
        %v924 = vpop.f32.mrb[0].mxu0
        %v925 = vadd.f32 0.0, %v924
        %v926 = vpop.f32.mrb[0].mxu0
        %v927 = vadd.f32 0.0, %v926
        %v928 = vpop.f32.mrb[0].mxu0
        %v929 = vpop.f32.mrb[0].mxu0
        %930 = vdwg.mxu0
        %v931 = vadd.f32 %v453, %v884
        %v932 = vadd.f32 %v454, %v886
        %v933 = vadd.f32 %v455, %v925
        %v934 = vadd.f32 %v456, %v927
        %935 = vst [vmem:[#allocation2] sm:$0xff] %v931
        %936 = vst [vmem:[#allocation2 + $0x8] sm:$0xff] %v932
        %937 = vst [vmem:[#allocation2 + $0x10] sm:$0xff] %v933
        %938 = vst [vmem:[#allocation2 + $0x18] sm:$0xff] %v934
        %p939 = scmp.eq.s32.totalorder %s33, 2
        // Predicated region
        $region81: #{tpu_custom_call.1} parent=55 // pred_check
          %p940 = pneg %p939
        $region82: #{tpu_custom_call.1} parent=55 // pred_check_branch
          %942 = sbr.rel (%p940) target = $region84
        $region83: #{tpu_custom_call.1} parent=55 // pred_region
          %v943 = vld [vmem:[#allocation2] sm:$0xff]
          %v944 = vld [vmem:[#allocation2 + $0x8] sm:$0xff]
          %v945 = vld [vmem:[#allocation2 + $0x10] sm:$0xff]
          %v946 = vld [vmem:[#allocation2 + $0x18] sm:$0xff]
          %v947 = vld [vmem:[%s2] sm:$0xf]
          %v949 = vlaneseq
          %v950 = vshrl.u32 %v949, 7
          %v951 = vsub.s32 0, %v950
          %v952 = vrot.slane %v947, %v951
          %v953 = vlaneseq
          %v954 = vshrl.u32 %v953, 7
          %v955 = vsub.s32 1, %v954
          %v956 = vrot.slane %v947, %v955
          %v957 = vlaneseq
          %v958 = vshrl.u32 %v957, 7
          %v959 = vsub.s32 2, %v958
          %v960 = vrot.slane %v947, %v959
          %v961 = vlaneseq
          %v962 = vshrl.u32 %v961, 7
          %v963 = vsub.s32 3, %v962
          %v964 = vrot.slane %v947, %v963
          %v969 = vadd.f32 %v943, %v952
          %v970 = vadd.f32 %v944, %v956
          %v971 = vadd.f32 %v945, %v960
          %v972 = vadd.f32 %v946, %v964
          %v973 = vpack.c.bf16 %v969, %v969
          %v974 = vpack.c.bf16 %v970, %v970
          %v975 = vpack.c.bf16 %v971, %v971
          %v976 = vpack.c.bf16 %v972, %v972
          %v977 = vld [vmem:[#allocation8] sm:$0xff]
          %v978 = vld [vmem:[#allocation8 + $0x8] sm:$0xff]
          %v979 = vld [vmem:[#allocation8 + $0x10] sm:$0xff]
          %v980 = vld [vmem:[#allocation8 + $0x18] sm:$0xff]
          %v981 = vld [vmem:[#allocation8 + $0x20] sm:$0xff]
          %v982 = vld [vmem:[#allocation8 + $0x28] sm:$0xff]
          %v983 = vld [vmem:[#allocation8 + $0x30] sm:$0xff]
          %v984 = vld [vmem:[#allocation8 + $0x38] sm:$0xff]
          %v985 = vld [vmem:[#allocation8 + $0x40] sm:$0xff]
          %v986 = vld [vmem:[#allocation8 + $0x48] sm:$0xff]
          %v987 = vld [vmem:[#allocation8 + $0x50] sm:$0xff]
          %v988 = vld [vmem:[#allocation8 + $0x58] sm:$0xff]
          %v989 = vld [vmem:[#allocation8 + $0x60] sm:$0xff]
          %v990 = vld [vmem:[#allocation8 + $0x68] sm:$0xff]
          %v991 = vld [vmem:[#allocation8 + $0x70] sm:$0xff]
          %v992 = vld [vmem:[#allocation8 + $0x78] sm:$0xff]
          %v993 = vld [vmem:[#allocation8 + $0x80] sm:$0xff]
          %v994 = vld [vmem:[#allocation8 + $0x88] sm:$0xff]
          %v995 = vld [vmem:[#allocation8 + $0x90] sm:$0xff]
          %v996 = vld [vmem:[#allocation8 + $0x98] sm:$0xff]
          %v997 = vld [vmem:[#allocation8 + $0xa0] sm:$0xff]
          %v998 = vld [vmem:[#allocation8 + $0xa8] sm:$0xff]
          %v999 = vld [vmem:[#allocation8 + $0xb0] sm:$0xff]
          %v1000 = vld [vmem:[#allocation8 + $0xb8] sm:$0xff]
          %v1001 = vld [vmem:[#allocation8 + $0xc0] sm:$0xff]
          %v1002 = vld [vmem:[#allocation8 + $0xc8] sm:$0xff]
          %v1003 = vld [vmem:[#allocation8 + $0xd0] sm:$0xff]
          %v1004 = vld [vmem:[#allocation8 + $0xd8] sm:$0xff]
          %v1005 = vld [vmem:[#allocation8 + $0xe0] sm:$0xff]
          %v1006 = vld [vmem:[#allocation8 + $0xe8] sm:$0xff]
          %v1007 = vld [vmem:[#allocation8 + $0xf0] sm:$0xff]
          %v1008 = vld [vmem:[#allocation8 + $0xf8] sm:$0xff]
          %v1009 = vld [vmem:[#allocation8 + $0x100] sm:$0xff]
          %v1010 = vld [vmem:[#allocation8 + $0x108] sm:$0xff]
          %v1011 = vld [vmem:[#allocation8 + $0x110] sm:$0xff]
          %v1012 = vld [vmem:[#allocation8 + $0x118] sm:$0xff]
          %v1013 = vld [vmem:[#allocation8 + $0x120] sm:$0xff]
          %v1014 = vld [vmem:[#allocation8 + $0x128] sm:$0xff]
          %v1015 = vld [vmem:[#allocation8 + $0x130] sm:$0xff]
          %v1016 = vld [vmem:[#allocation8 + $0x138] sm:$0xff]
          %v1017 = vld [vmem:[#allocation8 + $0x140] sm:$0xff]
          %v1018 = vld [vmem:[#allocation8 + $0x148] sm:$0xff]
          %v1019 = vld [vmem:[#allocation8 + $0x150] sm:$0xff]
          %v1020 = vld [vmem:[#allocation8 + $0x158] sm:$0xff]
          %v1021 = vld [vmem:[#allocation8 + $0x160] sm:$0xff]
          %v1022 = vld [vmem:[#allocation8 + $0x168] sm:$0xff]
          %v1023 = vld [vmem:[#allocation8 + $0x170] sm:$0xff]
          %v1024 = vld [vmem:[#allocation8 + $0x178] sm:$0xff]
          %v1025 = vld [vmem:[#allocation8 + $0x180] sm:$0xff]
          %v1026 = vld [vmem:[#allocation8 + $0x188] sm:$0xff]
          %v1027 = vld [vmem:[#allocation8 + $0x190] sm:$0xff]
          %v1028 = vld [vmem:[#allocation8 + $0x198] sm:$0xff]
          %v1029 = vld [vmem:[#allocation8 + $0x1a0] sm:$0xff]
          %v1030 = vld [vmem:[#allocation8 + $0x1a8] sm:$0xff]
          %v1031 = vld [vmem:[#allocation8 + $0x1b0] sm:$0xff]
          %v1032 = vld [vmem:[#allocation8 + $0x1b8] sm:$0xff]
          %v1033 = vld [vmem:[#allocation8 + $0x1c0] sm:$0xff]
          %v1034 = vld [vmem:[#allocation8 + $0x1c8] sm:$0xff]
          %v1035 = vld [vmem:[#allocation8 + $0x1d0] sm:$0xff]
          %v1036 = vld [vmem:[#allocation8 + $0x1d8] sm:$0xff]
          %v1037 = vld [vmem:[#allocation8 + $0x1e0] sm:$0xff]
          %v1038 = vld [vmem:[#allocation8 + $0x1e8] sm:$0xff]
          %v1039 = vld [vmem:[#allocation8 + $0x1f0] sm:$0xff]
          %v1040 = vld [vmem:[#allocation8 + $0x1f8] sm:$0xff]
          %v1041 = vld [vmem:[#allocation8 + $0x200] sm:$0xff]
          %v1042 = vld [vmem:[#allocation8 + $0x208] sm:$0xff]
          %v1043 = vld [vmem:[#allocation8 + $0x210] sm:$0xff]
          %v1044 = vld [vmem:[#allocation8 + $0x218] sm:$0xff]
          %v1045 = vld [vmem:[#allocation8 + $0x220] sm:$0xff]
          %v1046 = vld [vmem:[#allocation8 + $0x228] sm:$0xff]
          %v1047 = vld [vmem:[#allocation8 + $0x230] sm:$0xff]
          %v1048 = vld [vmem:[#allocation8 + $0x238] sm:$0xff]
          %v1049 = vld [vmem:[#allocation8 + $0x240] sm:$0xff]
          %v1050 = vld [vmem:[#allocation8 + $0x248] sm:$0xff]
          %v1051 = vld [vmem:[#allocation8 + $0x250] sm:$0xff]
          %v1052 = vld [vmem:[#allocation8 + $0x258] sm:$0xff]
          %v1053 = vld [vmem:[#allocation8 + $0x260] sm:$0xff]
          %v1054 = vld [vmem:[#allocation8 + $0x268] sm:$0xff]
          %v1055 = vld [vmem:[#allocation8 + $0x270] sm:$0xff]
          %v1056 = vld [vmem:[#allocation8 + $0x278] sm:$0xff]
          %v1057 = vld [vmem:[#allocation8 + $0x280] sm:$0xff]
          %v1058 = vld [vmem:[#allocation8 + $0x288] sm:$0xff]
          %v1059 = vld [vmem:[#allocation8 + $0x290] sm:$0xff]
          %v1060 = vld [vmem:[#allocation8 + $0x298] sm:$0xff]
          %v1061 = vld [vmem:[#allocation8 + $0x2a0] sm:$0xff]
          %v1062 = vld [vmem:[#allocation8 + $0x2a8] sm:$0xff]
          %v1063 = vld [vmem:[#allocation8 + $0x2b0] sm:$0xff]
          %v1064 = vld [vmem:[#allocation8 + $0x2b8] sm:$0xff]
          %v1065 = vld [vmem:[#allocation8 + $0x2c0] sm:$0xff]
          %v1066 = vld [vmem:[#allocation8 + $0x2c8] sm:$0xff]
          %v1067 = vld [vmem:[#allocation8 + $0x2d0] sm:$0xff]
          %v1068 = vld [vmem:[#allocation8 + $0x2d8] sm:$0xff]
          %v1069 = vld [vmem:[#allocation8 + $0x2e0] sm:$0xff]
          %v1070 = vld [vmem:[#allocation8 + $0x2e8] sm:$0xff]
          %v1071 = vld [vmem:[#allocation8 + $0x2f0] sm:$0xff]
          %v1072 = vld [vmem:[#allocation8 + $0x2f8] sm:$0xff]
          %v1073 = vld [vmem:[#allocation8 + $0x300] sm:$0xff]
          %v1074 = vld [vmem:[#allocation8 + $0x308] sm:$0xff]
          %v1075 = vld [vmem:[#allocation8 + $0x310] sm:$0xff]
          %v1076 = vld [vmem:[#allocation8 + $0x318] sm:$0xff]
          %v1077 = vld [vmem:[#allocation8 + $0x320] sm:$0xff]
          %v1078 = vld [vmem:[#allocation8 + $0x328] sm:$0xff]
          %v1079 = vld [vmem:[#allocation8 + $0x330] sm:$0xff]
          %v1080 = vld [vmem:[#allocation8 + $0x338] sm:$0xff]
          %v1081 = vld [vmem:[#allocation8 + $0x340] sm:$0xff]
          %v1082 = vld [vmem:[#allocation8 + $0x348] sm:$0xff]
          %v1083 = vld [vmem:[#allocation8 + $0x350] sm:$0xff]
          %v1084 = vld [vmem:[#allocation8 + $0x358] sm:$0xff]
          %v1085 = vld [vmem:[#allocation8 + $0x360] sm:$0xff]
          %v1086 = vld [vmem:[#allocation8 + $0x368] sm:$0xff]
          %v1087 = vld [vmem:[#allocation8 + $0x370] sm:$0xff]
          %v1088 = vld [vmem:[#allocation8 + $0x378] sm:$0xff]
          %v1089 = vld [vmem:[#allocation8 + $0x380] sm:$0xff]
          %v1090 = vld [vmem:[#allocation8 + $0x388] sm:$0xff]
          %v1091 = vld [vmem:[#allocation8 + $0x390] sm:$0xff]
          %v1092 = vld [vmem:[#allocation8 + $0x398] sm:$0xff]
          %v1093 = vld [vmem:[#allocation8 + $0x3a0] sm:$0xff]
          %v1094 = vld [vmem:[#allocation8 + $0x3a8] sm:$0xff]
          %v1095 = vld [vmem:[#allocation8 + $0x3b0] sm:$0xff]
          %v1096 = vld [vmem:[#allocation8 + $0x3b8] sm:$0xff]
          %v1097 = vld [vmem:[#allocation8 + $0x3c0] sm:$0xff]
          %v1098 = vld [vmem:[#allocation8 + $0x3c8] sm:$0xff]
          %v1099 = vld [vmem:[#allocation8 + $0x3d0] sm:$0xff]
          %v1100 = vld [vmem:[#allocation8 + $0x3d8] sm:$0xff]
          %v1101 = vld [vmem:[#allocation8 + $0x3e0] sm:$0xff]
          %v1102 = vld [vmem:[#allocation8 + $0x3e8] sm:$0xff]
          %v1103 = vld [vmem:[#allocation8 + $0x3f0] sm:$0xff]
          %v1104 = vld [vmem:[#allocation8 + $0x3f8] sm:$0xff]
          %v1105 = vld [vmem:[%s4] sm:$0xf]
          %v1107 = vlaneseq
          %v1108 = vshrl.u32 %v1107, 7
          %v1109 = vsub.s32 0, %v1108
          %v1110 = vrot.slane %v1105, %v1109
          %v1111 = vlaneseq
          %v1112 = vshrl.u32 %v1111, 7
          %v1113 = vsub.s32 1, %v1112
          %v1114 = vrot.slane %v1105, %v1113
          %v1115 = vlaneseq
          %v1116 = vshrl.u32 %v1115, 7
          %v1117 = vsub.s32 2, %v1116
          %v1118 = vrot.slane %v1105, %v1117
          %v1119 = vlaneseq
          %v1120 = vshrl.u32 %v1119, 7
          %v1121 = vsub.s32 3, %v1120
          %v1122 = vrot.slane %v1105, %v1121
          %v1255 = vunpack.c.l.b16 %v977
          %v1256 = vunpack.c.h.b16 %v977
          %v1257 = vunpack.c.l.b16 %v978
          %v1258 = vunpack.c.h.b16 %v978
          %v1259 = vunpack.c.l.b16 %v979
          %v1260 = vunpack.c.h.b16 %v979
          %v1261 = vunpack.c.l.b16 %v980
          %v1262 = vunpack.c.h.b16 %v980
          %v1263 = vunpack.c.l.b16 %v981
          %v1264 = vunpack.c.h.b16 %v981
          %v1265 = vunpack.c.l.b16 %v982
          %v1266 = vunpack.c.h.b16 %v982
          %v1267 = vunpack.c.l.b16 %v983
          %v1268 = vunpack.c.h.b16 %v983
          %v1269 = vunpack.c.l.b16 %v984
          %v1270 = vunpack.c.h.b16 %v984
          %v1271 = vunpack.c.l.b16 %v985
          %v1272 = vunpack.c.h.b16 %v985
          %v1273 = vunpack.c.l.b16 %v986
          %v1274 = vunpack.c.h.b16 %v986
          %v1275 = vunpack.c.l.b16 %v987
          %v1276 = vunpack.c.h.b16 %v987
          %v1277 = vunpack.c.l.b16 %v988
          %v1278 = vunpack.c.h.b16 %v988
          %v1279 = vunpack.c.l.b16 %v989
          %v1280 = vunpack.c.h.b16 %v989
          %v1281 = vunpack.c.l.b16 %v990
          %v1282 = vunpack.c.h.b16 %v990
          %v1283 = vunpack.c.l.b16 %v991
          %v1284 = vunpack.c.h.b16 %v991
          %v1285 = vunpack.c.l.b16 %v992
          %v1286 = vunpack.c.h.b16 %v992
          %v1287 = vunpack.c.l.b16 %v993
          %v1288 = vunpack.c.h.b16 %v993
          %v1289 = vunpack.c.l.b16 %v994
          %v1290 = vunpack.c.h.b16 %v994
          %v1291 = vunpack.c.l.b16 %v995
          %v1292 = vunpack.c.h.b16 %v995
          %v1293 = vunpack.c.l.b16 %v996
          %v1294 = vunpack.c.h.b16 %v996
          %v1295 = vunpack.c.l.b16 %v997
          %v1296 = vunpack.c.h.b16 %v997
          %v1297 = vunpack.c.l.b16 %v998
          %v1298 = vunpack.c.h.b16 %v998
          %v1299 = vunpack.c.l.b16 %v999
          %v1300 = vunpack.c.h.b16 %v999
          %v1301 = vunpack.c.l.b16 %v1000
          %v1302 = vunpack.c.h.b16 %v1000
          %v1303 = vunpack.c.l.b16 %v1001
          %v1304 = vunpack.c.h.b16 %v1001
          %v1305 = vunpack.c.l.b16 %v1002
          %v1306 = vunpack.c.h.b16 %v1002
          %v1307 = vunpack.c.l.b16 %v1003
          %v1308 = vunpack.c.h.b16 %v1003
          %v1309 = vunpack.c.l.b16 %v1004
          %v1310 = vunpack.c.h.b16 %v1004
          %v1311 = vunpack.c.l.b16 %v1005
          %v1312 = vunpack.c.h.b16 %v1005
          %v1313 = vunpack.c.l.b16 %v1006
          %v1314 = vunpack.c.h.b16 %v1006
          %v1315 = vunpack.c.l.b16 %v1007
          %v1316 = vunpack.c.h.b16 %v1007
          %v1317 = vunpack.c.l.b16 %v1008
          %v1318 = vunpack.c.h.b16 %v1008
          %v1319 = vunpack.c.l.b16 %v1009
          %v1320 = vunpack.c.h.b16 %v1009
          %v1321 = vunpack.c.l.b16 %v1010
          %v1322 = vunpack.c.h.b16 %v1010
          %v1323 = vunpack.c.l.b16 %v1011
          %v1324 = vunpack.c.h.b16 %v1011
          %v1325 = vunpack.c.l.b16 %v1012
          %v1326 = vunpack.c.h.b16 %v1012
          %v1327 = vunpack.c.l.b16 %v1013
          %v1328 = vunpack.c.h.b16 %v1013
          %v1329 = vunpack.c.l.b16 %v1014
          %v1330 = vunpack.c.h.b16 %v1014
          %v1331 = vunpack.c.l.b16 %v1015
          %v1332 = vunpack.c.h.b16 %v1015
          %v1333 = vunpack.c.l.b16 %v1016
          %v1334 = vunpack.c.h.b16 %v1016
          %v1335 = vunpack.c.l.b16 %v1017
          %v1336 = vunpack.c.h.b16 %v1017
          %v1337 = vunpack.c.l.b16 %v1018
          %v1338 = vunpack.c.h.b16 %v1018
          %v1339 = vunpack.c.l.b16 %v1019
          %v1340 = vunpack.c.h.b16 %v1019
          %v1341 = vunpack.c.l.b16 %v1020
          %v1342 = vunpack.c.h.b16 %v1020
          %v1343 = vunpack.c.l.b16 %v1021
          %v1344 = vunpack.c.h.b16 %v1021
          %v1345 = vunpack.c.l.b16 %v1022
          %v1346 = vunpack.c.h.b16 %v1022
          %v1347 = vunpack.c.l.b16 %v1023
          %v1348 = vunpack.c.h.b16 %v1023
          %v1349 = vunpack.c.l.b16 %v1024
          %v1350 = vunpack.c.h.b16 %v1024
          %v1351 = vunpack.c.l.b16 %v1025
          %v1352 = vunpack.c.h.b16 %v1025
          %v1353 = vunpack.c.l.b16 %v1026
          %v1354 = vunpack.c.h.b16 %v1026
          %v1355 = vunpack.c.l.b16 %v1027
          %v1356 = vunpack.c.h.b16 %v1027
          %v1357 = vunpack.c.l.b16 %v1028
          %v1358 = vunpack.c.h.b16 %v1028
          %v1359 = vunpack.c.l.b16 %v1029
          %v1360 = vunpack.c.h.b16 %v1029
          %v1361 = vunpack.c.l.b16 %v1030
          %v1362 = vunpack.c.h.b16 %v1030
          %v1363 = vunpack.c.l.b16 %v1031
          %v1364 = vunpack.c.h.b16 %v1031
          %v1365 = vunpack.c.l.b16 %v1032
          %v1366 = vunpack.c.h.b16 %v1032
          %v1367 = vunpack.c.l.b16 %v1033
          %v1368 = vunpack.c.h.b16 %v1033
          %v1369 = vunpack.c.l.b16 %v1034
          %v1370 = vunpack.c.h.b16 %v1034
          %v1371 = vunpack.c.l.b16 %v1035
          %v1372 = vunpack.c.h.b16 %v1035
          %v1373 = vunpack.c.l.b16 %v1036
          %v1374 = vunpack.c.h.b16 %v1036
          %v1375 = vunpack.c.l.b16 %v1037
          %v1376 = vunpack.c.h.b16 %v1037
          %v1377 = vunpack.c.l.b16 %v1038
          %v1378 = vunpack.c.h.b16 %v1038
          %v1379 = vunpack.c.l.b16 %v1039
          %v1380 = vunpack.c.h.b16 %v1039
          %v1381 = vunpack.c.l.b16 %v1040
          %v1382 = vunpack.c.h.b16 %v1040
          %v1383 = vunpack.c.l.b16 %v1041
          %v1384 = vunpack.c.h.b16 %v1041
          %v1385 = vunpack.c.l.b16 %v1042
          %v1386 = vunpack.c.h.b16 %v1042
          %v1387 = vunpack.c.l.b16 %v1043
          %v1388 = vunpack.c.h.b16 %v1043
          %v1389 = vunpack.c.l.b16 %v1044
          %v1390 = vunpack.c.h.b16 %v1044
          %v1391 = vunpack.c.l.b16 %v1045
          %v1392 = vunpack.c.h.b16 %v1045
          %v1393 = vunpack.c.l.b16 %v1046
          %v1394 = vunpack.c.h.b16 %v1046
          %v1395 = vunpack.c.l.b16 %v1047
          %v1396 = vunpack.c.h.b16 %v1047
          %v1397 = vunpack.c.l.b16 %v1048
          %v1398 = vunpack.c.h.b16 %v1048
          %v1399 = vunpack.c.l.b16 %v1049
          %v1400 = vunpack.c.h.b16 %v1049
          %v1401 = vunpack.c.l.b16 %v1050
          %v1402 = vunpack.c.h.b16 %v1050
          %v1403 = vunpack.c.l.b16 %v1051
          %v1404 = vunpack.c.h.b16 %v1051
          %v1405 = vunpack.c.l.b16 %v1052
          %v1406 = vunpack.c.h.b16 %v1052
          %v1407 = vunpack.c.l.b16 %v1053
          %v1408 = vunpack.c.h.b16 %v1053
          %v1409 = vunpack.c.l.b16 %v1054
          %v1410 = vunpack.c.h.b16 %v1054
          %v1411 = vunpack.c.l.b16 %v1055
          %v1412 = vunpack.c.h.b16 %v1055
          %v1413 = vunpack.c.l.b16 %v1056
          %v1414 = vunpack.c.h.b16 %v1056
          %v1415 = vunpack.c.l.b16 %v1057
          %v1416 = vunpack.c.h.b16 %v1057
          %v1417 = vunpack.c.l.b16 %v1058
          %v1418 = vunpack.c.h.b16 %v1058
          %v1419 = vunpack.c.l.b16 %v1059
          %v1420 = vunpack.c.h.b16 %v1059
          %v1421 = vunpack.c.l.b16 %v1060
          %v1422 = vunpack.c.h.b16 %v1060
          %v1423 = vunpack.c.l.b16 %v1061
          %v1424 = vunpack.c.h.b16 %v1061
          %v1425 = vunpack.c.l.b16 %v1062
          %v1426 = vunpack.c.h.b16 %v1062
          %v1427 = vunpack.c.l.b16 %v1063
          %v1428 = vunpack.c.h.b16 %v1063
          %v1429 = vunpack.c.l.b16 %v1064
          %v1430 = vunpack.c.h.b16 %v1064
          %v1431 = vunpack.c.l.b16 %v1065
          %v1432 = vunpack.c.h.b16 %v1065
          %v1433 = vunpack.c.l.b16 %v1066
          %v1434 = vunpack.c.h.b16 %v1066
          %v1435 = vunpack.c.l.b16 %v1067
          %v1436 = vunpack.c.h.b16 %v1067
          %v1437 = vunpack.c.l.b16 %v1068
          %v1438 = vunpack.c.h.b16 %v1068
          %v1439 = vunpack.c.l.b16 %v1069
          %v1440 = vunpack.c.h.b16 %v1069
          %v1441 = vunpack.c.l.b16 %v1070
          %v1442 = vunpack.c.h.b16 %v1070
          %v1443 = vunpack.c.l.b16 %v1071
          %v1444 = vunpack.c.h.b16 %v1071
          %v1445 = vunpack.c.l.b16 %v1072
          %v1446 = vunpack.c.h.b16 %v1072
          %v1447 = vunpack.c.l.b16 %v1073
          %v1448 = vunpack.c.h.b16 %v1073
          %v1449 = vunpack.c.l.b16 %v1074
          %v1450 = vunpack.c.h.b16 %v1074
          %v1451 = vunpack.c.l.b16 %v1075
          %v1452 = vunpack.c.h.b16 %v1075
          %v1453 = vunpack.c.l.b16 %v1076
          %v1454 = vunpack.c.h.b16 %v1076
          %v1455 = vunpack.c.l.b16 %v1077
          %v1456 = vunpack.c.h.b16 %v1077
          %v1457 = vunpack.c.l.b16 %v1078
          %v1458 = vunpack.c.h.b16 %v1078
          %v1459 = vunpack.c.l.b16 %v1079
          %v1460 = vunpack.c.h.b16 %v1079
          %v1461 = vunpack.c.l.b16 %v1080
          %v1462 = vunpack.c.h.b16 %v1080
          %v1463 = vunpack.c.l.b16 %v1081
          %v1464 = vunpack.c.h.b16 %v1081
          %v1465 = vunpack.c.l.b16 %v1082
          %v1466 = vunpack.c.h.b16 %v1082
          %v1467 = vunpack.c.l.b16 %v1083
          %v1468 = vunpack.c.h.b16 %v1083
          %v1469 = vunpack.c.l.b16 %v1084
          %v1470 = vunpack.c.h.b16 %v1084
          %v1471 = vunpack.c.l.b16 %v1085
          %v1472 = vunpack.c.h.b16 %v1085
          %v1473 = vunpack.c.l.b16 %v1086
          %v1474 = vunpack.c.h.b16 %v1086
          %v1475 = vunpack.c.l.b16 %v1087
          %v1476 = vunpack.c.h.b16 %v1087
          %v1477 = vunpack.c.l.b16 %v1088
          %v1478 = vunpack.c.h.b16 %v1088
          %v1479 = vunpack.c.l.b16 %v1089
          %v1480 = vunpack.c.h.b16 %v1089
          %v1481 = vunpack.c.l.b16 %v1090
          %v1482 = vunpack.c.h.b16 %v1090
          %v1483 = vunpack.c.l.b16 %v1091
          %v1484 = vunpack.c.h.b16 %v1091
          %v1485 = vunpack.c.l.b16 %v1092
          %v1486 = vunpack.c.h.b16 %v1092
          %v1487 = vunpack.c.l.b16 %v1093
          %v1488 = vunpack.c.h.b16 %v1093
          %v1489 = vunpack.c.l.b16 %v1094
          %v1490 = vunpack.c.h.b16 %v1094
          %v1491 = vunpack.c.l.b16 %v1095
          %v1492 = vunpack.c.h.b16 %v1095
          %v1493 = vunpack.c.l.b16 %v1096
          %v1494 = vunpack.c.h.b16 %v1096
          %v1495 = vunpack.c.l.b16 %v1097
          %v1496 = vunpack.c.h.b16 %v1097
          %v1497 = vunpack.c.l.b16 %v1098
          %v1498 = vunpack.c.h.b16 %v1098
          %v1499 = vunpack.c.l.b16 %v1099
          %v1500 = vunpack.c.h.b16 %v1099
          %v1501 = vunpack.c.l.b16 %v1100
          %v1502 = vunpack.c.h.b16 %v1100
          %v1503 = vunpack.c.l.b16 %v1101
          %v1504 = vunpack.c.h.b16 %v1101
          %v1505 = vunpack.c.l.b16 %v1102
          %v1506 = vunpack.c.h.b16 %v1102
          %v1507 = vunpack.c.l.b16 %v1103
          %v1508 = vunpack.c.h.b16 %v1103
          %v1509 = vunpack.c.l.b16 %v1104
          %v1510 = vunpack.c.h.b16 %v1104
          %v1511 = vpack.c.b16 %v1259, %v1255
          %v1512 = vpack.c.b16 %v1260, %v1256
          %v1513 = vpack.c.b16 %v1261, %v1257
          %v1514 = vpack.c.b16 %v1262, %v1258
          %v1515 = vpack.c.b16 %v1267, %v1263
          %v1516 = vpack.c.b16 %v1268, %v1264
          %v1517 = vpack.c.b16 %v1269, %v1265
          %v1518 = vpack.c.b16 %v1270, %v1266
          %v1519 = vpack.c.b16 %v1275, %v1271
          %v1520 = vpack.c.b16 %v1276, %v1272
          %v1521 = vpack.c.b16 %v1277, %v1273
          %v1522 = vpack.c.b16 %v1278, %v1274
          %v1523 = vpack.c.b16 %v1283, %v1279
          %v1524 = vpack.c.b16 %v1284, %v1280
          %v1525 = vpack.c.b16 %v1285, %v1281
          %v1526 = vpack.c.b16 %v1286, %v1282
          %v1527 = vpack.c.b16 %v1291, %v1287
          %v1528 = vpack.c.b16 %v1292, %v1288
          %v1529 = vpack.c.b16 %v1293, %v1289
          %v1530 = vpack.c.b16 %v1294, %v1290
          %v1531 = vpack.c.b16 %v1299, %v1295
          %v1532 = vpack.c.b16 %v1300, %v1296
          %v1533 = vpack.c.b16 %v1301, %v1297
          %v1534 = vpack.c.b16 %v1302, %v1298
          %v1535 = vpack.c.b16 %v1307, %v1303
          %v1536 = vpack.c.b16 %v1308, %v1304
          %v1537 = vpack.c.b16 %v1309, %v1305
          %v1538 = vpack.c.b16 %v1310, %v1306
          %v1539 = vpack.c.b16 %v1315, %v1311
          %v1540 = vpack.c.b16 %v1316, %v1312
          %v1541 = vpack.c.b16 %v1317, %v1313
          %v1542 = vpack.c.b16 %v1318, %v1314
          %v1543 = vpack.c.b16 %v1323, %v1319
          %v1544 = vpack.c.b16 %v1324, %v1320
          %v1545 = vpack.c.b16 %v1325, %v1321
          %v1546 = vpack.c.b16 %v1326, %v1322
          %v1547 = vpack.c.b16 %v1331, %v1327
          %v1548 = vpack.c.b16 %v1332, %v1328
          %v1549 = vpack.c.b16 %v1333, %v1329
          %v1550 = vpack.c.b16 %v1334, %v1330
          %v1551 = vpack.c.b16 %v1339, %v1335
          %v1552 = vpack.c.b16 %v1340, %v1336
          %v1553 = vpack.c.b16 %v1341, %v1337
          %v1554 = vpack.c.b16 %v1342, %v1338
          %v1555 = vpack.c.b16 %v1347, %v1343
          %v1556 = vpack.c.b16 %v1348, %v1344
          %v1557 = vpack.c.b16 %v1349, %v1345
          %v1558 = vpack.c.b16 %v1350, %v1346
          %v1559 = vpack.c.b16 %v1355, %v1351
          %v1560 = vpack.c.b16 %v1356, %v1352
          %v1561 = vpack.c.b16 %v1357, %v1353
          %v1562 = vpack.c.b16 %v1358, %v1354
          %v1563 = vpack.c.b16 %v1363, %v1359
          %v1564 = vpack.c.b16 %v1364, %v1360
          %v1565 = vpack.c.b16 %v1365, %v1361
          %v1566 = vpack.c.b16 %v1366, %v1362
          %v1567 = vpack.c.b16 %v1371, %v1367
          %v1568 = vpack.c.b16 %v1372, %v1368
          %v1569 = vpack.c.b16 %v1373, %v1369
          %v1570 = vpack.c.b16 %v1374, %v1370
          %v1571 = vpack.c.b16 %v1379, %v1375
          %v1572 = vpack.c.b16 %v1380, %v1376
          %v1573 = vpack.c.b16 %v1381, %v1377
          %v1574 = vpack.c.b16 %v1382, %v1378
          %v1575 = vpack.c.b16 %v1387, %v1383
          %v1576 = vpack.c.b16 %v1388, %v1384
          %v1577 = vpack.c.b16 %v1389, %v1385
          %v1578 = vpack.c.b16 %v1390, %v1386
          %v1579 = vpack.c.b16 %v1395, %v1391
          %v1580 = vpack.c.b16 %v1396, %v1392
          %v1581 = vpack.c.b16 %v1397, %v1393
          %v1582 = vpack.c.b16 %v1398, %v1394
          %v1583 = vpack.c.b16 %v1403, %v1399
          %v1584 = vpack.c.b16 %v1404, %v1400
          %v1585 = vpack.c.b16 %v1405, %v1401
          %v1586 = vpack.c.b16 %v1406, %v1402
          %v1587 = vpack.c.b16 %v1411, %v1407
          %v1588 = vpack.c.b16 %v1412, %v1408
          %v1589 = vpack.c.b16 %v1413, %v1409
          %v1590 = vpack.c.b16 %v1414, %v1410
          %v1591 = vpack.c.b16 %v1419, %v1415
          %v1592 = vpack.c.b16 %v1420, %v1416
          %v1593 = vpack.c.b16 %v1421, %v1417
          %v1594 = vpack.c.b16 %v1422, %v1418
          %v1595 = vpack.c.b16 %v1427, %v1423
          %v1596 = vpack.c.b16 %v1428, %v1424
          %v1597 = vpack.c.b16 %v1429, %v1425
          %v1598 = vpack.c.b16 %v1430, %v1426
          %v1599 = vpack.c.b16 %v1435, %v1431
          %v1600 = vpack.c.b16 %v1436, %v1432
          %v1601 = vpack.c.b16 %v1437, %v1433
          %v1602 = vpack.c.b16 %v1438, %v1434
          %v1603 = vpack.c.b16 %v1443, %v1439
          %v1604 = vpack.c.b16 %v1444, %v1440
          %v1605 = vpack.c.b16 %v1445, %v1441
          %v1606 = vpack.c.b16 %v1446, %v1442
          %v1607 = vpack.c.b16 %v1451, %v1447
          %v1608 = vpack.c.b16 %v1452, %v1448
          %v1609 = vpack.c.b16 %v1453, %v1449
          %v1610 = vpack.c.b16 %v1454, %v1450
          %v1611 = vpack.c.b16 %v1459, %v1455
          %v1612 = vpack.c.b16 %v1460, %v1456
          %v1613 = vpack.c.b16 %v1461, %v1457
          %v1614 = vpack.c.b16 %v1462, %v1458
          %v1615 = vpack.c.b16 %v1467, %v1463
          %v1616 = vpack.c.b16 %v1468, %v1464
          %v1617 = vpack.c.b16 %v1469, %v1465
          %v1618 = vpack.c.b16 %v1470, %v1466
          %v1619 = vpack.c.b16 %v1475, %v1471
          %v1620 = vpack.c.b16 %v1476, %v1472
          %v1621 = vpack.c.b16 %v1477, %v1473
          %v1622 = vpack.c.b16 %v1478, %v1474
          %v1623 = vpack.c.b16 %v1483, %v1479
          %v1624 = vpack.c.b16 %v1484, %v1480
          %v1625 = vpack.c.b16 %v1485, %v1481
          %v1626 = vpack.c.b16 %v1486, %v1482
          %v1627 = vpack.c.b16 %v1491, %v1487
          %v1628 = vpack.c.b16 %v1492, %v1488
          %v1629 = vpack.c.b16 %v1493, %v1489
          %v1630 = vpack.c.b16 %v1494, %v1490
          %v1631 = vpack.c.b16 %v1499, %v1495
          %v1632 = vpack.c.b16 %v1500, %v1496
          %v1633 = vpack.c.b16 %v1501, %v1497
          %v1634 = vpack.c.b16 %v1502, %v1498
          %v1635 = vpack.c.b16 %v1507, %v1503
          %v1636 = vpack.c.b16 %v1508, %v1504
          %v1637 = vpack.c.b16 %v1509, %v1505
          %v1638 = vpack.c.b16 %v1510, %v1506
          %1767 = vmatprep.subr.bf16.mxu0 %v1512
          %1768 = vmatpush1.bf16.msra.mxu0 %v1511
          %1769 = vmatprep.subr.bf16.mxu0 %v1516
          %1770 = vmatpush1.bf16.msra.mxu0 %v1515
          %1771 = vmatprep.subr.bf16.mxu0 %v1520
          %1772 = vmatpush1.bf16.msra.mxu0 %v1519
          %1773 = vmatprep.subr.bf16.mxu0 %v1524
          %1774 = vmatpush1.bf16.msra.mxu0 %v1523
          %1775 = vmatprep.subr.bf16.mxu0 %v1528
          %1776 = vmatpush1.bf16.msra.mxu0 %v1527
          %1777 = vmatprep.subr.bf16.mxu0 %v1532
          %1778 = vmatpush1.bf16.msra.mxu0 %v1531
          %1779 = vmatprep.subr.bf16.mxu0 %v1536
          %1780 = vmatpush1.bf16.msra.mxu0 %v1535
          %1781 = vmatprep.subr.bf16.mxu0 %v1540
          %1782 = vmatpush1.bf16.msra.mxu0 %v1539
          %1783 = vmatprep.subr.bf16.mxu0 %v1544
          %1784 = vmatpush1.bf16.msra.mxu0 %v1543
          %1785 = vmatprep.subr.bf16.mxu0 %v1548
          %1786 = vmatpush1.bf16.msra.mxu0 %v1547
          %1787 = vmatprep.subr.bf16.mxu0 %v1552
          %1788 = vmatpush1.bf16.msra.mxu0 %v1551
          %1789 = vmatprep.subr.bf16.mxu0 %v1556
          %1790 = vmatpush1.bf16.msra.mxu0 %v1555
          %1791 = vmatprep.subr.bf16.mxu0 %v1560
          %1792 = vmatpush1.bf16.msra.mxu0 %v1559
          %1793 = vmatprep.subr.bf16.mxu0 %v1564
          %1794 = vmatpush1.bf16.msra.mxu0 %v1563
          %1795 = vmatprep.subr.bf16.mxu0 %v1568
          %1796 = vmatpush1.bf16.msra.mxu0 %v1567
          %1797 = vmatprep.subr.bf16.mxu0 %v1572
          %1798 = vmatpush1.bf16.msra.mxu0 %v1571
          %1799 = vmatprep.mubr.bf16.mxu0 %v974
          %1800 = vmatmul.mubr.bf16.gmra.mrb[0].mxu0 %v973
          %v1801 = vpop.f32.mrb[0].mxu0
          %v1802 = vadd.f32 %v1110, %v1801
          %v1803 = vpop.f32.mrb[0].mxu0
          %v1804 = vadd.f32 %v1114, %v1803
          %v1805 = vpop.f32.mrb[0].mxu0
          %v1806 = vpop.f32.mrb[0].mxu0
          %1807 = vdwg.mxu0
          %1808 = vmatprep.subr.bf16.mxu0 %v1576
          %1809 = vmatpush1.bf16.msra.mxu0 %v1575
          %1810 = vmatprep.subr.bf16.mxu0 %v1580
          %1811 = vmatpush1.bf16.msra.mxu0 %v1579
          %1812 = vmatprep.subr.bf16.mxu0 %v1584
          %1813 = vmatpush1.bf16.msra.mxu0 %v1583
          %1814 = vmatprep.subr.bf16.mxu0 %v1588
          %1815 = vmatpush1.bf16.msra.mxu0 %v1587
          %1816 = vmatprep.subr.bf16.mxu0 %v1592
          %1817 = vmatpush1.bf16.msra.mxu0 %v1591
          %1818 = vmatprep.subr.bf16.mxu0 %v1596
          %1819 = vmatpush1.bf16.msra.mxu0 %v1595
          %1820 = vmatprep.subr.bf16.mxu0 %v1600
          %1821 = vmatpush1.bf16.msra.mxu0 %v1599
          %1822 = vmatprep.subr.bf16.mxu0 %v1604
          %1823 = vmatpush1.bf16.msra.mxu0 %v1603
          %1824 = vmatprep.subr.bf16.mxu0 %v1608
          %1825 = vmatpush1.bf16.msra.mxu0 %v1607
          %1826 = vmatprep.subr.bf16.mxu0 %v1612
          %1827 = vmatpush1.bf16.msra.mxu0 %v1611
          %1828 = vmatprep.subr.bf16.mxu0 %v1616
          %1829 = vmatpush1.bf16.msra.mxu0 %v1615
          %1830 = vmatprep.subr.bf16.mxu0 %v1620
          %1831 = vmatpush1.bf16.msra.mxu0 %v1619
          %1832 = vmatprep.subr.bf16.mxu0 %v1624
          %1833 = vmatpush1.bf16.msra.mxu0 %v1623
          %1834 = vmatprep.subr.bf16.mxu0 %v1628
          %1835 = vmatpush1.bf16.msra.mxu0 %v1627
          %1836 = vmatprep.subr.bf16.mxu0 %v1632
          %1837 = vmatpush1.bf16.msra.mxu0 %v1631
          %1838 = vmatprep.subr.bf16.mxu0 %v1636
          %1839 = vmatpush1.bf16.msra.mxu0 %v1635
          %1840 = vmatprep.mubr.bf16.mxu0 %v976
          %1841 = vmatmul.mubr.bf16.gmra.mrb[0].mxu0 %v975
          %v1842 = vpop.f32.mrb[0].mxu0
          %v1843 = vadd.f32 %v1802, %v1842
          %v1844 = vpop.f32.mrb[0].mxu0
          %v1845 = vadd.f32 %v1804, %v1844
          %v1846 = vpop.f32.mrb[0].mxu0
          %v1847 = vpop.f32.mrb[0].mxu0
          %1848 = vdwg.mxu0
          %1849 = vmatprep.subr.bf16.mxu0 %v1514
          %1850 = vmatpush1.bf16.msra.mxu0 %v1513
          %1851 = vmatprep.subr.bf16.mxu0 %v1518
          %1852 = vmatpush1.bf16.msra.mxu0 %v1517
          %1853 = vmatprep.subr.bf16.mxu0 %v1522
          %1854 = vmatpush1.bf16.msra.mxu0 %v1521
          %1855 = vmatprep.subr.bf16.mxu0 %v1526
          %1856 = vmatpush1.bf16.msra.mxu0 %v1525
          %1857 = vmatprep.subr.bf16.mxu0 %v1530
          %1858 = vmatpush1.bf16.msra.mxu0 %v1529
          %1859 = vmatprep.subr.bf16.mxu0 %v1534
          %1860 = vmatpush1.bf16.msra.mxu0 %v1533
          %1861 = vmatprep.subr.bf16.mxu0 %v1538
          %1862 = vmatpush1.bf16.msra.mxu0 %v1537
          %1863 = vmatprep.subr.bf16.mxu0 %v1542
          %1864 = vmatpush1.bf16.msra.mxu0 %v1541
          %1865 = vmatprep.subr.bf16.mxu0 %v1546
          %1866 = vmatpush1.bf16.msra.mxu0 %v1545
          %1867 = vmatprep.subr.bf16.mxu0 %v1550
          %1868 = vmatpush1.bf16.msra.mxu0 %v1549
          %1869 = vmatprep.subr.bf16.mxu0 %v1554
          %1870 = vmatpush1.bf16.msra.mxu0 %v1553
          %1871 = vmatprep.subr.bf16.mxu0 %v1558
          %1872 = vmatpush1.bf16.msra.mxu0 %v1557
          %1873 = vmatprep.subr.bf16.mxu0 %v1562
          %1874 = vmatpush1.bf16.msra.mxu0 %v1561
          %1875 = vmatprep.subr.bf16.mxu0 %v1566
          %1876 = vmatpush1.bf16.msra.mxu0 %v1565
          %1877 = vmatprep.subr.bf16.mxu0 %v1570
          %1878 = vmatpush1.bf16.msra.mxu0 %v1569
          %1879 = vmatprep.subr.bf16.mxu0 %v1574
          %1880 = vmatpush1.bf16.msra.mxu0 %v1573
          %1881 = vmatprep.mubr.bf16.mxu0 %v974
          %1882 = vmatmul.mubr.bf16.gmra.mrb[0].mxu0 %v973
          %v1883 = vpop.f32.mrb[0].mxu0
          %v1884 = vadd.f32 %v1118, %v1883
          %v1885 = vpop.f32.mrb[0].mxu0
          %v1886 = vadd.f32 %v1122, %v1885
          %v1887 = vpop.f32.mrb[0].mxu0
          %v1888 = vpop.f32.mrb[0].mxu0
          %1889 = vdwg.mxu0
          %1890 = vmatprep.subr.bf16.mxu0 %v1578
          %1891 = vmatpush1.bf16.msra.mxu0 %v1577
          %1892 = vmatprep.subr.bf16.mxu0 %v1582
          %1893 = vmatpush1.bf16.msra.mxu0 %v1581
          %1894 = vmatprep.subr.bf16.mxu0 %v1586
          %1895 = vmatpush1.bf16.msra.mxu0 %v1585
          %1896 = vmatprep.subr.bf16.mxu0 %v1590
          %1897 = vmatpush1.bf16.msra.mxu0 %v1589
          %1898 = vmatprep.subr.bf16.mxu0 %v1594
          %1899 = vmatpush1.bf16.msra.mxu0 %v1593
          %1900 = vmatprep.subr.bf16.mxu0 %v1598
          %1901 = vmatpush1.bf16.msra.mxu0 %v1597
          %1902 = vmatprep.subr.bf16.mxu0 %v1602
          %1903 = vmatpush1.bf16.msra.mxu0 %v1601
          %1904 = vmatprep.subr.bf16.mxu0 %v1606
          %1905 = vmatpush1.bf16.msra.mxu0 %v1605
          %1906 = vmatprep.subr.bf16.mxu0 %v1610
          %1907 = vmatpush1.bf16.msra.mxu0 %v1609
          %1908 = vmatprep.subr.bf16.mxu0 %v1614
          %1909 = vmatpush1.bf16.msra.mxu0 %v1613
          %1910 = vmatprep.subr.bf16.mxu0 %v1618
          %1911 = vmatpush1.bf16.msra.mxu0 %v1617
          %1912 = vmatprep.subr.bf16.mxu0 %v1622
          %1913 = vmatpush1.bf16.msra.mxu0 %v1621
          %1914 = vmatprep.subr.bf16.mxu0 %v1626
          %1915 = vmatpush1.bf16.msra.mxu0 %v1625
          %1916 = vmatprep.subr.bf16.mxu0 %v1630
          %1917 = vmatpush1.bf16.msra.mxu0 %v1629
          %1918 = vmatprep.subr.bf16.mxu0 %v1634
          %1919 = vmatpush1.bf16.msra.mxu0 %v1633
          %1920 = vmatprep.subr.bf16.mxu0 %v1638
          %1921 = vmatpush1.bf16.msra.mxu0 %v1637
          %1922 = vmatprep.mubr.bf16.mxu0 %v976
          %1923 = vmatmul.mubr.bf16.gmra.mrb[0].mxu0 %v975
          %v1924 = vpop.f32.mrb[0].mxu0
          %v1925 = vadd.f32 %v1884, %v1924
          %v1926 = vpop.f32.mrb[0].mxu0
          %v1927 = vadd.f32 %v1886, %v1926
          %v1928 = vpop.f32.mrb[0].mxu0
          %v1929 = vpop.f32.mrb[0].mxu0
          %1930 = vdwg.mxu0
          %v1931 = vmax.f32 %v1843, 0.0
          %v1932 = vmax.f32 %v1845, 0.0
          %v1933 = vmax.f32 %v1925, 0.0
          %v1934 = vmax.f32 %v1927, 0.0
          %v1935 = vpack.c.bf16 %v1931, %v1931
          %v1936 = vpack.c.bf16 %v1932, %v1932
          %v1937 = vpack.c.bf16 %v1933, %v1933
          %v1938 = vpack.c.bf16 %v1934, %v1934
          %v1939 = vld [vmem:[#allocation9] sm:$0xff]
          %v1940 = vld [vmem:[#allocation9 + $0x8] sm:$0xff]
          %v1941 = vld [vmem:[#allocation9 + $0x10] sm:$0xff]
          %v1942 = vld [vmem:[#allocation9 + $0x18] sm:$0xff]
          %v1943 = vld [vmem:[#allocation9 + $0x20] sm:$0xff]
          %v1944 = vld [vmem:[#allocation9 + $0x28] sm:$0xff]
          %v1945 = vld [vmem:[#allocation9 + $0x30] sm:$0xff]
          %v1946 = vld [vmem:[#allocation9 + $0x38] sm:$0xff]
          %v1947 = vld [vmem:[#allocation9 + $0x40] sm:$0xff]
          %v1948 = vld [vmem:[#allocation9 + $0x48] sm:$0xff]
          %v1949 = vld [vmem:[#allocation9 + $0x50] sm:$0xff]
          %v1950 = vld [vmem:[#allocation9 + $0x58] sm:$0xff]
          %v1951 = vld [vmem:[#allocation9 + $0x60] sm:$0xff]
          %v1952 = vld [vmem:[#allocation9 + $0x68] sm:$0xff]
          %v1953 = vld [vmem:[#allocation9 + $0x70] sm:$0xff]
          %v1954 = vld [vmem:[#allocation9 + $0x78] sm:$0xff]
          %v1955 = vld [vmem:[#allocation9 + $0x80] sm:$0xff]
          %v1956 = vld [vmem:[#allocation9 + $0x88] sm:$0xff]
          %v1957 = vld [vmem:[#allocation9 + $0x90] sm:$0xff]
          %v1958 = vld [vmem:[#allocation9 + $0x98] sm:$0xff]
          %v1959 = vld [vmem:[#allocation9 + $0xa0] sm:$0xff]
          %v1960 = vld [vmem:[#allocation9 + $0xa8] sm:$0xff]
          %v1961 = vld [vmem:[#allocation9 + $0xb0] sm:$0xff]
          %v1962 = vld [vmem:[#allocation9 + $0xb8] sm:$0xff]
          %v1963 = vld [vmem:[#allocation9 + $0xc0] sm:$0xff]
          %v1964 = vld [vmem:[#allocation9 + $0xc8] sm:$0xff]
          %v1965 = vld [vmem:[#allocation9 + $0xd0] sm:$0xff]
          %v1966 = vld [vmem:[#allocation9 + $0xd8] sm:$0xff]
          %v1967 = vld [vmem:[#allocation9 + $0xe0] sm:$0xff]
          %v1968 = vld [vmem:[#allocation9 + $0xe8] sm:$0xff]
          %v1969 = vld [vmem:[#allocation9 + $0xf0] sm:$0xff]
          %v1970 = vld [vmem:[#allocation9 + $0xf8] sm:$0xff]
          %v1971 = vld [vmem:[#allocation9 + $0x100] sm:$0xff]
          %v1972 = vld [vmem:[#allocation9 + $0x108] sm:$0xff]
          %v1973 = vld [vmem:[#allocation9 + $0x110] sm:$0xff]
          %v1974 = vld [vmem:[#allocation9 + $0x118] sm:$0xff]
          %v1975 = vld [vmem:[#allocation9 + $0x120] sm:$0xff]
          %v1976 = vld [vmem:[#allocation9 + $0x128] sm:$0xff]
          %v1977 = vld [vmem:[#allocation9 + $0x130] sm:$0xff]
          %v1978 = vld [vmem:[#allocation9 + $0x138] sm:$0xff]
          %v1979 = vld [vmem:[#allocation9 + $0x140] sm:$0xff]
          %v1980 = vld [vmem:[#allocation9 + $0x148] sm:$0xff]
          %v1981 = vld [vmem:[#allocation9 + $0x150] sm:$0xff]
          %v1982 = vld [vmem:[#allocation9 + $0x158] sm:$0xff]
          %v1983 = vld [vmem:[#allocation9 + $0x160] sm:$0xff]
          %v1984 = vld [vmem:[#allocation9 + $0x168] sm:$0xff]
          %v1985 = vld [vmem:[#allocation9 + $0x170] sm:$0xff]
          %v1986 = vld [vmem:[#allocation9 + $0x178] sm:$0xff]
          %v1987 = vld [vmem:[#allocation9 + $0x180] sm:$0xff]
          %v1988 = vld [vmem:[#allocation9 + $0x188] sm:$0xff]
          %v1989 = vld [vmem:[#allocation9 + $0x190] sm:$0xff]
          %v1990 = vld [vmem:[#allocation9 + $0x198] sm:$0xff]
          %v1991 = vld [vmem:[#allocation9 + $0x1a0] sm:$0xff]
          %v1992 = vld [vmem:[#allocation9 + $0x1a8] sm:$0xff]
          %v1993 = vld [vmem:[#allocation9 + $0x1b0] sm:$0xff]
          %v1994 = vld [vmem:[#allocation9 + $0x1b8] sm:$0xff]
          %v1995 = vld [vmem:[#allocation9 + $0x1c0] sm:$0xff]
          %v1996 = vld [vmem:[#allocation9 + $0x1c8] sm:$0xff]
          %v1997 = vld [vmem:[#allocation9 + $0x1d0] sm:$0xff]
          %v1998 = vld [vmem:[#allocation9 + $0x1d8] sm:$0xff]
          %v1999 = vld [vmem:[#allocation9 + $0x1e0] sm:$0xff]
          %v2000 = vld [vmem:[#allocation9 + $0x1e8] sm:$0xff]
          %v2001 = vld [vmem:[#allocation9 + $0x1f0] sm:$0xff]
          %v2002 = vld [vmem:[#allocation9 + $0x1f8] sm:$0xff]
          %v2003 = vld [vmem:[%s6] sm:$0x3]
          %v2005 = vlaneseq
          %v2006 = vshrl.u32 %v2005, 7
          %v2007 = vsub.s32 0, %v2006
          %v2008 = vrot.slane %v2003, %v2007
          %v2009 = vlaneseq
          %v2010 = vshrl.u32 %v2009, 7
          %v2011 = vsub.s32 1, %v2010
          %v2012 = vrot.slane %v2003, %v2011
          %v2079 = vunpack.c.l.b16 %v1939
          %v2080 = vunpack.c.h.b16 %v1939
          %v2081 = vunpack.c.l.b16 %v1940
          %v2082 = vunpack.c.h.b16 %v1940
          %v2083 = vunpack.c.l.b16 %v1941
          %v2084 = vunpack.c.h.b16 %v1941
          %v2085 = vunpack.c.l.b16 %v1942
          %v2086 = vunpack.c.h.b16 %v1942
          %v2087 = vunpack.c.l.b16 %v1943
          %v2088 = vunpack.c.h.b16 %v1943
          %v2089 = vunpack.c.l.b16 %v1944
          %v2090 = vunpack.c.h.b16 %v1944
          %v2091 = vunpack.c.l.b16 %v1945
          %v2092 = vunpack.c.h.b16 %v1945
          %v2093 = vunpack.c.l.b16 %v1946
          %v2094 = vunpack.c.h.b16 %v1946
          %v2095 = vunpack.c.l.b16 %v1947
          %v2096 = vunpack.c.h.b16 %v1947
          %v2097 = vunpack.c.l.b16 %v1948
          %v2098 = vunpack.c.h.b16 %v1948
          %v2099 = vunpack.c.l.b16 %v1949
          %v2100 = vunpack.c.h.b16 %v1949
          %v2101 = vunpack.c.l.b16 %v1950
          %v2102 = vunpack.c.h.b16 %v1950
          %v2103 = vunpack.c.l.b16 %v1951
          %v2104 = vunpack.c.h.b16 %v1951
          %v2105 = vunpack.c.l.b16 %v1952
          %v2106 = vunpack.c.h.b16 %v1952
          %v2107 = vunpack.c.l.b16 %v1953
          %v2108 = vunpack.c.h.b16 %v1953
          %v2109 = vunpack.c.l.b16 %v1954
          %v2110 = vunpack.c.h.b16 %v1954
          %v2111 = vunpack.c.l.b16 %v1955
          %v2112 = vunpack.c.h.b16 %v1955
          %v2113 = vunpack.c.l.b16 %v1956
          %v2114 = vunpack.c.h.b16 %v1956
          %v2115 = vunpack.c.l.b16 %v1957
          %v2116 = vunpack.c.h.b16 %v1957
          %v2117 = vunpack.c.l.b16 %v1958
          %v2118 = vunpack.c.h.b16 %v1958
          %v2119 = vunpack.c.l.b16 %v1959
          %v2120 = vunpack.c.h.b16 %v1959
          %v2121 = vunpack.c.l.b16 %v1960
          %v2122 = vunpack.c.h.b16 %v1960
          %v2123 = vunpack.c.l.b16 %v1961
          %v2124 = vunpack.c.h.b16 %v1961
          %v2125 = vunpack.c.l.b16 %v1962
          %v2126 = vunpack.c.h.b16 %v1962
          %v2127 = vunpack.c.l.b16 %v1963
          %v2128 = vunpack.c.h.b16 %v1963
          %v2129 = vunpack.c.l.b16 %v1964
          %v2130 = vunpack.c.h.b16 %v1964
          %v2131 = vunpack.c.l.b16 %v1965
          %v2132 = vunpack.c.h.b16 %v1965
          %v2133 = vunpack.c.l.b16 %v1966
          %v2134 = vunpack.c.h.b16 %v1966
          %v2135 = vunpack.c.l.b16 %v1967
          %v2136 = vunpack.c.h.b16 %v1967
          %v2137 = vunpack.c.l.b16 %v1968
          %v2138 = vunpack.c.h.b16 %v1968
          %v2139 = vunpack.c.l.b16 %v1969
          %v2140 = vunpack.c.h.b16 %v1969
          %v2141 = vunpack.c.l.b16 %v1970
          %v2142 = vunpack.c.h.b16 %v1970
          %v2143 = vunpack.c.l.b16 %v1971
          %v2144 = vunpack.c.h.b16 %v1971
          %v2145 = vunpack.c.l.b16 %v1972
          %v2146 = vunpack.c.h.b16 %v1972
          %v2147 = vunpack.c.l.b16 %v1973
          %v2148 = vunpack.c.h.b16 %v1973
          %v2149 = vunpack.c.l.b16 %v1974
          %v2150 = vunpack.c.h.b16 %v1974
          %v2151 = vunpack.c.l.b16 %v1975
          %v2152 = vunpack.c.h.b16 %v1975
          %v2153 = vunpack.c.l.b16 %v1976
          %v2154 = vunpack.c.h.b16 %v1976
          %v2155 = vunpack.c.l.b16 %v1977
          %v2156 = vunpack.c.h.b16 %v1977
          %v2157 = vunpack.c.l.b16 %v1978
          %v2158 = vunpack.c.h.b16 %v1978
          %v2159 = vunpack.c.l.b16 %v1979
          %v2160 = vunpack.c.h.b16 %v1979
          %v2161 = vunpack.c.l.b16 %v1980
          %v2162 = vunpack.c.h.b16 %v1980
          %v2163 = vunpack.c.l.b16 %v1981
          %v2164 = vunpack.c.h.b16 %v1981
          %v2165 = vunpack.c.l.b16 %v1982
          %v2166 = vunpack.c.h.b16 %v1982
          %v2167 = vunpack.c.l.b16 %v1983
          %v2168 = vunpack.c.h.b16 %v1983
          %v2169 = vunpack.c.l.b16 %v1984
          %v2170 = vunpack.c.h.b16 %v1984
          %v2171 = vunpack.c.l.b16 %v1985
          %v2172 = vunpack.c.h.b16 %v1985
          %v2173 = vunpack.c.l.b16 %v1986
          %v2174 = vunpack.c.h.b16 %v1986
          %v2175 = vunpack.c.l.b16 %v1987
          %v2176 = vunpack.c.h.b16 %v1987
          %v2177 = vunpack.c.l.b16 %v1988
          %v2178 = vunpack.c.h.b16 %v1988
          %v2179 = vunpack.c.l.b16 %v1989
          %v2180 = vunpack.c.h.b16 %v1989
          %v2181 = vunpack.c.l.b16 %v1990
          %v2182 = vunpack.c.h.b16 %v1990
          %v2183 = vunpack.c.l.b16 %v1991
          %v2184 = vunpack.c.h.b16 %v1991
          %v2185 = vunpack.c.l.b16 %v1992
          %v2186 = vunpack.c.h.b16 %v1992
          %v2187 = vunpack.c.l.b16 %v1993
          %v2188 = vunpack.c.h.b16 %v1993
          %v2189 = vunpack.c.l.b16 %v1994
          %v2190 = vunpack.c.h.b16 %v1994
          %v2191 = vunpack.c.l.b16 %v1995
          %v2192 = vunpack.c.h.b16 %v1995
          %v2193 = vunpack.c.l.b16 %v1996
          %v2194 = vunpack.c.h.b16 %v1996
          %v2195 = vunpack.c.l.b16 %v1997
          %v2196 = vunpack.c.h.b16 %v1997
          %v2197 = vunpack.c.l.b16 %v1998
          %v2198 = vunpack.c.h.b16 %v1998
          %v2199 = vunpack.c.l.b16 %v1999
          %v2200 = vunpack.c.h.b16 %v1999
          %v2201 = vunpack.c.l.b16 %v2000
          %v2202 = vunpack.c.h.b16 %v2000
          %v2203 = vunpack.c.l.b16 %v2001
          %v2204 = vunpack.c.h.b16 %v2001
          %v2205 = vunpack.c.l.b16 %v2002
          %v2206 = vunpack.c.h.b16 %v2002
          %v2207 = vpack.c.b16 %v2081, %v2079
          %v2208 = vpack.c.b16 %v2082, %v2080
          %v2209 = vpack.c.b16 %v2085, %v2083
          %v2210 = vpack.c.b16 %v2086, %v2084
          %v2211 = vpack.c.b16 %v2089, %v2087
          %v2212 = vpack.c.b16 %v2090, %v2088
          %v2213 = vpack.c.b16 %v2093, %v2091
          %v2214 = vpack.c.b16 %v2094, %v2092
          %v2215 = vpack.c.b16 %v2097, %v2095
          %v2216 = vpack.c.b16 %v2098, %v2096
          %v2217 = vpack.c.b16 %v2101, %v2099
          %v2218 = vpack.c.b16 %v2102, %v2100
          %v2219 = vpack.c.b16 %v2105, %v2103
          %v2220 = vpack.c.b16 %v2106, %v2104
          %v2221 = vpack.c.b16 %v2109, %v2107
          %v2222 = vpack.c.b16 %v2110, %v2108
          %v2223 = vpack.c.b16 %v2113, %v2111
          %v2224 = vpack.c.b16 %v2114, %v2112
          %v2225 = vpack.c.b16 %v2117, %v2115
          %v2226 = vpack.c.b16 %v2118, %v2116
          %v2227 = vpack.c.b16 %v2121, %v2119
          %v2228 = vpack.c.b16 %v2122, %v2120
          %v2229 = vpack.c.b16 %v2125, %v2123
          %v2230 = vpack.c.b16 %v2126, %v2124
          %v2231 = vpack.c.b16 %v2129, %v2127
          %v2232 = vpack.c.b16 %v2130, %v2128
          %v2233 = vpack.c.b16 %v2133, %v2131
          %v2234 = vpack.c.b16 %v2134, %v2132
          %v2235 = vpack.c.b16 %v2137, %v2135
          %v2236 = vpack.c.b16 %v2138, %v2136
          %v2237 = vpack.c.b16 %v2141, %v2139
          %v2238 = vpack.c.b16 %v2142, %v2140
          %v2239 = vpack.c.b16 %v2145, %v2143
          %v2240 = vpack.c.b16 %v2146, %v2144
          %v2241 = vpack.c.b16 %v2149, %v2147
          %v2242 = vpack.c.b16 %v2150, %v2148
          %v2243 = vpack.c.b16 %v2153, %v2151
          %v2244 = vpack.c.b16 %v2154, %v2152
          %v2245 = vpack.c.b16 %v2157, %v2155
          %v2246 = vpack.c.b16 %v2158, %v2156
          %v2247 = vpack.c.b16 %v2161, %v2159
          %v2248 = vpack.c.b16 %v2162, %v2160
          %v2249 = vpack.c.b16 %v2165, %v2163
          %v2250 = vpack.c.b16 %v2166, %v2164
          %v2251 = vpack.c.b16 %v2169, %v2167
          %v2252 = vpack.c.b16 %v2170, %v2168
          %v2253 = vpack.c.b16 %v2173, %v2171
          %v2254 = vpack.c.b16 %v2174, %v2172
          %v2255 = vpack.c.b16 %v2177, %v2175
          %v2256 = vpack.c.b16 %v2178, %v2176
          %v2257 = vpack.c.b16 %v2181, %v2179
          %v2258 = vpack.c.b16 %v2182, %v2180
          %v2259 = vpack.c.b16 %v2185, %v2183
          %v2260 = vpack.c.b16 %v2186, %v2184
          %v2261 = vpack.c.b16 %v2189, %v2187
          %v2262 = vpack.c.b16 %v2190, %v2188
          %v2263 = vpack.c.b16 %v2193, %v2191
          %v2264 = vpack.c.b16 %v2194, %v2192
          %v2265 = vpack.c.b16 %v2197, %v2195
          %v2266 = vpack.c.b16 %v2198, %v2196
          %v2267 = vpack.c.b16 %v2201, %v2199
          %v2268 = vpack.c.b16 %v2202, %v2200
          %v2269 = vpack.c.b16 %v2205, %v2203
          %v2270 = vpack.c.b16 %v2206, %v2204
          %2335 = vmatprep.subr.bf16.mxu0 %v2208
          %2336 = vmatpush1.bf16.msra.mxu0 %v2207
          %2337 = vmatprep.subr.bf16.mxu0 %v2210
          %2338 = vmatpush1.bf16.msra.mxu0 %v2209
          %2339 = vmatprep.subr.bf16.mxu0 %v2212
          %2340 = vmatpush1.bf16.msra.mxu0 %v2211
          %2341 = vmatprep.subr.bf16.mxu0 %v2214
          %2342 = vmatpush1.bf16.msra.mxu0 %v2213
          %2343 = vmatprep.subr.bf16.mxu0 %v2216
          %2344 = vmatpush1.bf16.msra.mxu0 %v2215
          %2345 = vmatprep.subr.bf16.mxu0 %v2218
          %2346 = vmatpush1.bf16.msra.mxu0 %v2217
          %2347 = vmatprep.subr.bf16.mxu0 %v2220
          %2348 = vmatpush1.bf16.msra.mxu0 %v2219
          %2349 = vmatprep.subr.bf16.mxu0 %v2222
          %2350 = vmatpush1.bf16.msra.mxu0 %v2221
          %2351 = vmatprep.subr.bf16.mxu0 %v2224
          %2352 = vmatpush1.bf16.msra.mxu0 %v2223
          %2353 = vmatprep.subr.bf16.mxu0 %v2226
          %2354 = vmatpush1.bf16.msra.mxu0 %v2225
          %2355 = vmatprep.subr.bf16.mxu0 %v2228
          %2356 = vmatpush1.bf16.msra.mxu0 %v2227
          %2357 = vmatprep.subr.bf16.mxu0 %v2230
          %2358 = vmatpush1.bf16.msra.mxu0 %v2229
          %2359 = vmatprep.subr.bf16.mxu0 %v2232
          %2360 = vmatpush1.bf16.msra.mxu0 %v2231
          %2361 = vmatprep.subr.bf16.mxu0 %v2234
          %2362 = vmatpush1.bf16.msra.mxu0 %v2233
          %2363 = vmatprep.subr.bf16.mxu0 %v2236
          %2364 = vmatpush1.bf16.msra.mxu0 %v2235
          %2365 = vmatprep.subr.bf16.mxu0 %v2238
          %2366 = vmatpush1.bf16.msra.mxu0 %v2237
          %2367 = vmatprep.mubr.bf16.mxu0 %v1936
          %2368 = vmatmul.mubr.bf16.gmra.mrb[0].mxu0 %v1935
          %v2369 = vpop.f32.mrb[0].mxu0
          %v2370 = vadd.f32 %v2008, %v2369
          %v2371 = vpop.f32.mrb[0].mxu0
          %v2372 = vadd.f32 %v2012, %v2371
          %v2373 = vpop.f32.mrb[0].mxu0
          %v2374 = vpop.f32.mrb[0].mxu0
          %2375 = vdwg.mxu0
          %2376 = vmatprep.subr.bf16.mxu0 %v2240
          %2377 = vmatpush1.bf16.msra.mxu0 %v2239
          %2378 = vmatprep.subr.bf16.mxu0 %v2242
          %2379 = vmatpush1.bf16.msra.mxu0 %v2241
          %2380 = vmatprep.subr.bf16.mxu0 %v2244
          %2381 = vmatpush1.bf16.msra.mxu0 %v2243
          %2382 = vmatprep.subr.bf16.mxu0 %v2246
          %2383 = vmatpush1.bf16.msra.mxu0 %v2245
          %2384 = vmatprep.subr.bf16.mxu0 %v2248
          %2385 = vmatpush1.bf16.msra.mxu0 %v2247
          %2386 = vmatprep.subr.bf16.mxu0 %v2250
          %2387 = vmatpush1.bf16.msra.mxu0 %v2249
          %2388 = vmatprep.subr.bf16.mxu0 %v2252
          %2389 = vmatpush1.bf16.msra.mxu0 %v2251
          %2390 = vmatprep.subr.bf16.mxu0 %v2254
          %2391 = vmatpush1.bf16.msra.mxu0 %v2253
          %2392 = vmatprep.subr.bf16.mxu0 %v2256
          %2393 = vmatpush1.bf16.msra.mxu0 %v2255
          %2394 = vmatprep.subr.bf16.mxu0 %v2258
          %2395 = vmatpush1.bf16.msra.mxu0 %v2257
          %2396 = vmatprep.subr.bf16.mxu0 %v2260
          %2397 = vmatpush1.bf16.msra.mxu0 %v2259
          %2398 = vmatprep.subr.bf16.mxu0 %v2262
          %2399 = vmatpush1.bf16.msra.mxu0 %v2261
          %2400 = vmatprep.subr.bf16.mxu0 %v2264
          %2401 = vmatpush1.bf16.msra.mxu0 %v2263
          %2402 = vmatprep.subr.bf16.mxu0 %v2266
          %2403 = vmatpush1.bf16.msra.mxu0 %v2265
          %2404 = vmatprep.subr.bf16.mxu0 %v2268
          %2405 = vmatpush1.bf16.msra.mxu0 %v2267
          %2406 = vmatprep.subr.bf16.mxu0 %v2270
          %2407 = vmatpush1.bf16.msra.mxu0 %v2269
          %2408 = vmatprep.mubr.bf16.mxu0 %v1938
          %2409 = vmatmul.mubr.bf16.gmra.mrb[0].mxu0 %v1937
          %v2410 = vpop.f32.mrb[0].mxu0
          %v2411 = vadd.f32 %v2370, %v2410
          %v2412 = vpop.f32.mrb[0].mxu0
          %v2413 = vadd.f32 %v2372, %v2412
          %v2414 = vpop.f32.mrb[0].mxu0
          %v2415 = vpop.f32.mrb[0].mxu0
          %2416 = vdwg.mxu0
          %v2417 = vmax.f32 %v2411, 0.0
          %v2418 = vmax.f32 %v2413, 0.0
          %v2419 = vpack.c.bf16 %v2417, %v2417
          %v2420 = vpack.c.bf16 %v2418, %v2418
          %v2421 = vld [vmem:[#allocation11] sm:$0xf]
          %v2422 = vld [vmem:[#allocation11 + $0x4] sm:$0xf]
          %v2423 = vld [vmem:[#allocation11 + $0x8] sm:$0xf]
          %v2424 = vld [vmem:[#allocation11 + $0xc] sm:$0xf]
          %v2425 = vld [vmem:[#allocation11 + $0x10] sm:$0xf]
          %v2426 = vld [vmem:[#allocation11 + $0x14] sm:$0xf]
          %v2427 = vld [vmem:[#allocation11 + $0x18] sm:$0xf]
          %v2428 = vld [vmem:[#allocation11 + $0x1c] sm:$0xf]
          %v2429 = vld [vmem:[#allocation11 + $0x20] sm:$0xf]
          %v2430 = vld [vmem:[#allocation11 + $0x24] sm:$0xf]
          %v2431 = vld [vmem:[#allocation11 + $0x28] sm:$0xf]
          %v2432 = vld [vmem:[#allocation11 + $0x2c] sm:$0xf]
          %v2433 = vld [vmem:[#allocation11 + $0x30] sm:$0xf]
          %v2434 = vld [vmem:[#allocation11 + $0x34] sm:$0xf]
          %v2435 = vld [vmem:[#allocation11 + $0x38] sm:$0xf]
          %v2436 = vld [vmem:[#allocation11 + $0x3c] sm:$0xf]
          %v2437 = vld [vmem:[#allocation11 + $0x40] sm:$0xf]
          %v2438 = vld [vmem:[#allocation11 + $0x44] sm:$0xf]
          %v2439 = vld [vmem:[#allocation11 + $0x48] sm:$0xf]
          %v2440 = vld [vmem:[#allocation11 + $0x4c] sm:$0xf]
          %v2441 = vld [vmem:[#allocation11 + $0x50] sm:$0xf]
          %v2442 = vld [vmem:[#allocation11 + $0x54] sm:$0xf]
          %v2443 = vld [vmem:[#allocation11 + $0x58] sm:$0xf]
          %v2444 = vld [vmem:[#allocation11 + $0x5c] sm:$0xf]
          %v2445 = vld [vmem:[#allocation11 + $0x60] sm:$0xf]
          %v2446 = vld [vmem:[#allocation11 + $0x64] sm:$0xf]
          %v2447 = vld [vmem:[#allocation11 + $0x68] sm:$0xf]
          %v2448 = vld [vmem:[#allocation11 + $0x6c] sm:$0xf]
          %v2449 = vld [vmem:[#allocation11 + $0x70] sm:$0xf]
          %v2450 = vld [vmem:[#allocation11 + $0x74] sm:$0xf]
          %v2451 = vld [vmem:[#allocation11 + $0x78] sm:$0xf]
          %v2452 = vld [vmem:[#allocation11 + $0x7c] sm:$0xf]
          %v2453 = vld [vmem:[%s8] sm:$0x1]
          %v2455 = vlaneseq
          %v2456 = vshrl.u32 %v2455, 7
          %v2457 = vsub.s32 0, %v2456
          %v2458 = vrot.slane %v2453, %v2457
          %v2492 = vunpack.c.l.b16 %v2421
          %v2493 = vunpack.c.l.b16 %v2422
          %v2494 = vunpack.c.l.b16 %v2423
          %v2495 = vunpack.c.l.b16 %v2424
          %v2496 = vunpack.c.l.b16 %v2425
          %v2497 = vunpack.c.l.b16 %v2426
          %v2498 = vunpack.c.l.b16 %v2427
          %v2499 = vunpack.c.l.b16 %v2428
          %v2500 = vunpack.c.l.b16 %v2429
          %v2501 = vunpack.c.l.b16 %v2430
          %v2502 = vunpack.c.l.b16 %v2431
          %v2503 = vunpack.c.l.b16 %v2432
          %v2504 = vunpack.c.l.b16 %v2433
          %v2505 = vunpack.c.l.b16 %v2434
          %v2506 = vunpack.c.l.b16 %v2435
          %v2507 = vunpack.c.l.b16 %v2436
          %v2508 = vunpack.c.l.b16 %v2437
          %v2509 = vunpack.c.l.b16 %v2438
          %v2510 = vunpack.c.l.b16 %v2439
          %v2511 = vunpack.c.l.b16 %v2440
          %v2512 = vunpack.c.l.b16 %v2441
          %v2513 = vunpack.c.l.b16 %v2442
          %v2514 = vunpack.c.l.b16 %v2443
          %v2515 = vunpack.c.l.b16 %v2444
          %v2516 = vunpack.c.l.b16 %v2445
          %v2517 = vunpack.c.l.b16 %v2446
          %v2518 = vunpack.c.l.b16 %v2447
          %v2519 = vunpack.c.l.b16 %v2448
          %v2520 = vunpack.c.l.b16 %v2449
          %v2521 = vunpack.c.l.b16 %v2450
          %v2522 = vunpack.c.l.b16 %v2451
          %v2523 = vunpack.c.l.b16 %v2452
          %v2524 = vpack.c.b16 %v2493, %v2492
          %v2525 = vpack.c.b16 %v2495, %v2494
          %v2526 = vpack.c.b16 %v2497, %v2496
          %v2527 = vpack.c.b16 %v2499, %v2498
          %v2528 = vpack.c.b16 %v2501, %v2500
          %v2529 = vpack.c.b16 %v2503, %v2502
          %v2530 = vpack.c.b16 %v2505, %v2504
          %v2531 = vpack.c.b16 %v2507, %v2506
          %v2532 = vpack.c.b16 %v2509, %v2508
          %v2533 = vpack.c.b16 %v2511, %v2510
          %v2534 = vpack.c.b16 %v2513, %v2512
          %v2535 = vpack.c.b16 %v2515, %v2514
          %v2536 = vpack.c.b16 %v2517, %v2516
          %v2537 = vpack.c.b16 %v2519, %v2518
          %v2538 = vpack.c.b16 %v2521, %v2520
          %v2539 = vpack.c.b16 %v2523, %v2522
          %2556 = vmatprep.subr.bf16.mxu0 0
          %2557 = vmatpush1.bf16.msra.mxu0 %v2524
          %2558 = vmatprep.subr.bf16.mxu0 0
          %2559 = vmatpush1.bf16.msra.mxu0 %v2525
          %2560 = vmatprep.subr.bf16.mxu0 0
          %2561 = vmatpush1.bf16.msra.mxu0 %v2526
          %2562 = vmatprep.subr.bf16.mxu0 0
          %2563 = vmatpush1.bf16.msra.mxu0 %v2527
          %2564 = vmatprep.subr.bf16.mxu0 0
          %2565 = vmatpush1.bf16.msra.mxu0 %v2528
          %2566 = vmatprep.subr.bf16.mxu0 0
          %2567 = vmatpush1.bf16.msra.mxu0 %v2529
          %2568 = vmatprep.subr.bf16.mxu0 0
          %2569 = vmatpush1.bf16.msra.mxu0 %v2530
          %2570 = vmatprep.subr.bf16.mxu0 0
          %2571 = vmatpush1.bf16.msra.mxu0 %v2531
          %2572 = vmatprep.subr.bf16.mxu0 0
          %2573 = vmatpush1.bf16.msra.mxu0 %v2532
          %2574 = vmatprep.subr.bf16.mxu0 0
          %2575 = vmatpush1.bf16.msra.mxu0 %v2533
          %2576 = vmatprep.subr.bf16.mxu0 0
          %2577 = vmatpush1.bf16.msra.mxu0 %v2534
          %2578 = vmatprep.subr.bf16.mxu0 0
          %2579 = vmatpush1.bf16.msra.mxu0 %v2535
          %2580 = vmatprep.subr.bf16.mxu0 0
          %2581 = vmatpush1.bf16.msra.mxu0 %v2536
          %2582 = vmatprep.subr.bf16.mxu0 0
          %2583 = vmatpush1.bf16.msra.mxu0 %v2537
          %2584 = vmatprep.subr.bf16.mxu0 0
          %2585 = vmatpush1.bf16.msra.mxu0 %v2538
          %2586 = vmatprep.subr.bf16.mxu0 0
          %2587 = vmatpush1.bf16.msra.mxu0 %v2539
          %2588 = vmatprep.mubr.bf16.mxu0 %v2420
          %2589 = vmatmul.mubr.bf16.gmra.mrb[0].mxu0 %v2419
          %v2590 = vpop.f32.mrb[0].mxu0
          %v2591 = vadd.f32 %v2458, %v2590
          %v2592 = vpop.f32.mrb[0].mxu0
          %v2593 = vpop.f32.mrb[0].mxu0
          %v2594 = vpop.f32.mrb[0].mxu0
          %2595 = vdwg.mxu0
          %2596 = vst [vmem:[#allocation12] sm:$0xff] %v2591
        $region84: #{tpu_custom_call.1} parent=55 // pred_fallthru
          _
        // Predicated region
        $region85: #{tpu_custom_call.1} parent=55 // pred_check
          %p2597 = pneg %p259
        $region86: #{tpu_custom_call.1} parent=55 // pred_check_branch
          %2599 = sbr.rel (%p2597) target = $region88
        $region87: #{tpu_custom_call.1} parent=55 // pred_region
          %s2601 = ssub.s32 128, 128
          %2602 = vsyncadd [#allocation5], %s2601
          %s2603 = smul.addr %s32, 128
          %s2604 = scalar_lea.hbm %s9, %s2603
          %s2606 = sshll.u32 [#allocation12], 4
          %s2607 = int_to_ptr.vmem [resolvable:$true] %s2606
          %2609 = dma.vmem_to_hbm [thread:$0]  %s2607, 128, %s2604, [#allocation5]
        $region88: #{tpu_custom_call.1} parent=55 // pred_fallthru
          _
        // Predicated region
        $region89: #{tpu_custom_call.1} parent=55 // pred_check
          %p2610 = pneg %p259
        $region90: #{tpu_custom_call.1} parent=55 // pred_check_branch
          %2612 = sbr.rel (%p2610) target = $region92
        $region91: #{tpu_custom_call.1} parent=55 // pred_region
          %2613 = dma.done [#allocation5], 128
        $region92: #{tpu_custom_call.1} parent=55 // pred_fallthru
          _
      $region56: #{tpu_custom_call.1} parent=5 // pred_fallthru
        _
      %p2614 = scmp.le.s32.totalorder 2, %s23
      // Predicated region
      $region93: #{tpu_custom_call.1} parent=5 // pred_check
        %p2615 = pneg %p2614
      $region94: #{tpu_custom_call.1} parent=5 // pred_check_branch
        %2617 = sbr.rel (%p2615) target = $region96
      $region95: #{tpu_custom_call.1} parent=5 // pred_region
        %s2618 = ssub.s32 %s23, 2
      $region96: #{tpu_custom_call.1} parent=5 // pred_fallthru
        _
    $region6: #{tpu_custom_call.1} parent=1 // loop_footer
      %s27 = sadd.s32 1, %s23
    $region7: #{tpu_custom_call.1} parent=1 // loop_footer_branch
      %22 = sbr.rel target = $region3
    $region8: #{tpu_custom_call.1} parent=1 // loop_exit
      _
    %2619 = vsyncpa [#allocation4], 1
    %s2620 = scalar_lea.sflag [#allocation4], 1
    %2621 = vsyncpa %s2620, 1
    %2622 = vsyncpa [#allocation7], 1
    %s2623 = scalar_lea.sflag [#allocation7], 1
    %2624 = vsyncpa %s2623, 1
    %2625 = vsyncpa [#allocation10], 1
    %2626 = vsyncpa [#allocation5], 1
    %s2627 = scalar_lea.sflag [#allocation5], 1
    %2628 = vsyncpa %s2627, 1

</llo_original>
